<compile_context>
chip_gen: v7x
topology: tpu7x:2x2x1
jax: 0.10.0
libtpu: 0.0.40
codegen_flags: <defaults>
</compile_context>

<pallas_src>
import functools

import jax
import jax.numpy as jnp
from jax.experimental import pallas as pl
from jax.experimental.pallas import tpu as pltpu

_LANE = 128
_SUBLANE = 8
_BN_EPS = 1e-5


def _round_up(x, m):
    return (x + m - 1) // m * m


# ----------------------------------------------------------------------------
# Fused whole-network kernel
# ----------------------------------------------------------------------------
def _devnet_kernel(*refs, n_enc, n_dec, n_cls):
    """refs = (x_ref, w0, b0, w1, b1, ..., ae_ref, cls_ref)."""
    n_layers = n_enc + n_dec + n_cls
    x_ref = refs[0]
    wb = refs[1:1 + 2 * n_layers]
    ae_ref = refs[1 + 2 * n_layers]
    cls_ref = refs[2 + 2 * n_layers]

    def layer(h, idx, act):
        w = wb[2 * idx][...]                       # (Din_pad, Dout_pad) bf16
        b = wb[2 * idx + 1][...]                   # (1, Dout_pad)       f32
        y = jnp.dot(h.astype(w.dtype), w,
                    preferred_element_type=jnp.float32)
        y = y + b                                  # BN already folded in
        if act == "relu":
            y = jnp.maximum(y, 0.0)
        elif act == "sigmoid":
            y = jax.nn.sigmoid(y)
        return y                                   # f32

    h = x_ref[...]                                 # bf16 tile, no extra cast

    # encoder
    li = 0
    for _ in range(n_enc):
        h = layer(h, li, "relu")
        li += 1
    feature_vector = h

    # decoder (last block uses sigmoid)
    h = feature_vector
    for j in range(n_dec):
        h = layer(h, li, "sigmoid" if j == n_dec - 1 else "relu")
        li += 1
    ae_ref[...] = h.astype(ae_ref.dtype)

    # classifier (ReLU blocks + final plain Linear)
    c = feature_vector
    for j in range(n_cls):
        c = layer(c, li, "relu" if j < n_cls - 1 else "none")
        li += 1
    cls_ref[...] = c.astype(cls_ref.dtype)


# ----------------------------------------------------------------------------
# Parameter construction: Linear + folded BatchNorm, lane-padded, bf16 weights
# ----------------------------------------------------------------------------
def _init_linear_bn(key, din, dout, has_bn):
    kw, kb, kg, kbeta, km, kv = jax.random.split(key, 6)
    limit = 1.0 / jnp.sqrt(jnp.float32(din))
    w = jax.random.uniform(kw, (din, dout), jnp.float32, -limit, limit)
    b = jax.random.uniform(kb, (dout,), jnp.float32, -limit, limit)
    if has_bn:
        gamma = 1.0 + 0.1 * jax.random.normal(kg, (dout,), jnp.float32)
        beta = 0.1 * jax.random.normal(kbeta, (dout,), jnp.float32)
        rmean = 0.1 * jax.random.normal(km, (dout,), jnp.float32)
        rvar = 1.0 + 0.1 * jax.random.uniform(kv, (dout,), jnp.float32)
        scale = gamma / jnp.sqrt(rvar + _BN_EPS)
        shift = beta - rmean * scale
        w = w * scale[None, :]          # fold BN into the linear
        b = b * scale + shift
    return w, b


def _pad_layer(w, b):
    din, dout = w.shape
    din_p = _round_up(din, _LANE)
    dout_p = _round_up(dout, _LANE)
    w_p = jnp.zeros((din_p, dout_p), jnp.float32).at[:din, :dout].set(w)
    b_p = jnp.zeros((1, dout_p), jnp.float32).at[0, :dout].set(b)
    return w_p.astype(jnp.bfloat16), b_p


def init_devnet_params(key, feature_dim,
                       ae_hidden_neurons=(512, 256, 128),
                       cl_hidden_neurons=(64, 32, 10)):
    enc_dims = [feature_dim, *ae_hidden_neurons]
    dec_dims = enc_dims[::-1]
    cl_dims = [ae_hidden_neurons[-1], *cl_hidden_neurons, 1]

    layer_defs = []  # (din, dout, has_bn)
    for i in range(len(enc_dims) - 1):
        layer_defs.append((enc_dims[i], enc_dims[i + 1], True))
    for i in range(len(dec_dims) - 1):
        layer_defs.append((dec_dims[i], dec_dims[i + 1], True))
    for i in range(len(cl_dims) - 2):
        layer_defs.append((cl_dims[i], cl_dims[i + 1], True))
    layer_defs.append((cl_dims[-2], cl_dims[-1], False))

    keys = jax.random.split(key, len(layer_defs))
    weights, biases = [], []
    for k, (din, dout, has_bn) in zip(keys, layer_defs):
        w, b = _init_linear_bn(k, din, dout, has_bn)
        w_p, b_p = _pad_layer(w, b)
        weights.append(w_p)
        biases.append(b_p)

    return {
        "weights": weights,                 # bf16, (Din_pad, Dout_pad)
        "biases": biases,                   # f32,  (1, Dout_pad)
        "layout": (len(enc_dims) - 1, len(dec_dims) - 1, len(cl_dims) - 1),
        "feature_dim": feature_dim,
    }


# ----------------------------------------------------------------------------
# Forward pass (same dataflow as DevNet.forward)
# ----------------------------------------------------------------------------
def devnet_forward(x, params):
    weights = params["weights"]
    biases = params["biases"]
    n_enc, n_dec, n_cls = params["layout"]
    feature_dim = params["feature_dim"]

    B, fdim = x.shape
    fpad = weights[0].shape[0]

    # Batch tile: sublane-aligned, big enough to amortize the per-grid-step
    # overhead, small enough that double-buffered x/outputs + weights stay far
    # below the scoped VMEM budget (~4 MiB at tb=512).
    tb = min(512, _round_up(B, _SUBLANE))
    b_pad = _round_up(B, tb)

    # Stream the input as bf16 (halves the dominant input DMA); padded rows /
    # columns are zero so they add nothing.
    x_p = (jnp.zeros((b_pad, fpad), jnp.float32)
           .at[:B, :fdim].set(x.astype(jnp.float32))).astype(jnp.bfloat16)

    ae_width = weights[n_enc + n_dec - 1].shape[1]
    cls_width = weights[-1].shape[1]

    kernel = functools.partial(_devnet_kernel,
                               n_enc=n_enc, n_dec=n_dec, n_cls=n_cls)

    in_specs = [pl.BlockSpec((tb, fpad), lambda i: (i, 0))]
    wb_inputs = []
    for w, b in zip(weights, biases):
        # Constant index_map -> weights/biases stay VMEM-resident across
        # batch tiles (no re-DMA between grid steps).
        in_specs.append(pl.BlockSpec(w.shape, lambda i: (0, 0)))
        in_specs.append(pl.BlockSpec(b.shape, lambda i: (0, 0)))
        wb_inputs.extend([w, b])

    ae_p, cls_p = pl.pallas_call(
        kernel,
        out_shape=(jax.ShapeDtypeStruct((b_pad, ae_width), jnp.float32),
                   jax.ShapeDtypeStruct((b_pad, cls_width), jnp.float32)),
        grid_spec=pl.GridSpec(
            grid=(b_pad // tb,),
            in_specs=in_specs,
            out_specs=(pl.BlockSpec((tb, ae_width), lambda i: (i, 0)),
                       pl.BlockSpec((tb, cls_width), lambda i: (i, 0))),
        ),
        compiler_params=pltpu.CompilerParams(
            dimension_semantics=("parallel",)),
    )(x_p, *wb_inputs)

    ae_output = ae_p[:B, :feature_dim]
    cls_output = cls_p[:B, :1]
    return ae_output, cls_output


# ----------------------------------------------------------------------------
# Pure-JAX reference with identical dataflow (for numerical validation)
# ----------------------------------------------------------------------------
def devnet_reference(x, params):
    weights = params["weights"]
    biases = params["biases"]
    n_enc, n_dec, n_cls = params["layout"]
    feature_dim = params["feature_dim"]

    B, fdim = x.shape
    fpad = weights[0].shape[0]
    h = (jnp.zeros((B, fpad), jnp.float32)
         .at[:, :fdim].set(x.astype(jnp.float32))).astype(jnp.bfloat16)

    def layer(h, i, act):
        y = jnp.dot(h.astype(jnp.bfloat16), weights[i],
                    preferred_element_type=jnp.float32) + biases[i]
        if act == "relu":
            y = jnp.maximum(y, 0.0)
        elif act == "sigmoid":
            y = jax.nn.sigmoid(y)
        return y

    li = 0
    for _ in range(n_enc):
        h = layer(h, li, "relu")
        li += 1
    feat = h
    d = feat
    for j in range(n_dec):
        d = layer(d, li, "sigmoid" if j == n_dec - 1 else "relu")
        li += 1
    c = feat
    for j in range(n_cls):
        c = layer(c, li, "relu" if j < n_cls - 1 else "none")
        li += 1
    return d[:, :feature_dim], c[:, :1]


if __name__ == "__main__":
    batch = 8
    feature_dim = 32

    key = jax.random.PRNGKey(0)
    k_x, k_p = jax.random.split(key)
    x = jax.random.normal(k_x, (batch, feature_dim), jnp.float32)

    params = init_devnet_params(k_p, feature_dim)

    forward = jax.jit(lambda xx: devnet_forward(xx, params))
    ae_out, cls_out = forward(x)
    ae_out = jax.block_until_ready(ae_out)
    cls_out = jax.block_until_ready(cls_out)

    assert ae_out.shape == (batch, feature_dim), ae_out.shape
    assert cls_out.shape == (batch, 1), cls_out.shape
    assert bool(jnp.all(jnp.isfinite(ae_out)))
    assert bool(jnp.all(jnp.isfinite(cls_out)))
    # decoder output went through a sigmoid -> values in [0, 1]
    assert bool(jnp.all((ae_out >= 0.0) & (ae_out <= 1.0)))

    # Numerical check against an identical-dataflow pure-JAX reference.
    ae_ref, cls_ref = devnet_reference(x, params)
    assert bool(jnp.allclose(ae_out, ae_ref, atol=1e-2, rtol=1e-2))
    assert bool(jnp.allclose(cls_out, cls_ref, atol=1e-2, rtol=1e-2))

    print("KERNEL_OK")
</pallas_src>

<mosaic_0001>
module attributes {stable_mosaic.version = 11 : i64} {
  func.func @_devnet_kernel(%arg0: i32, %arg1: memref<8x128xbf16, #tpu.memory_space<vmem>>, %arg2: memref<128x512xbf16, #tpu.memory_space<vmem>>, %arg3: memref<1x512xf32, #tpu.memory_space<vmem>>, %arg4: memref<512x256xbf16, #tpu.memory_space<vmem>>, %arg5: memref<1x256xf32, #tpu.memory_space<vmem>>, %arg6: memref<256x128xbf16, #tpu.memory_space<vmem>>, %arg7: memref<1x128xf32, #tpu.memory_space<vmem>>, %arg8: memref<128x256xbf16, #tpu.memory_space<vmem>>, %arg9: memref<1x256xf32, #tpu.memory_space<vmem>>, %arg10: memref<256x512xbf16, #tpu.memory_space<vmem>>, %arg11: memref<1x512xf32, #tpu.memory_space<vmem>>, %arg12: memref<512x128xbf16, #tpu.memory_space<vmem>>, %arg13: memref<1x128xf32, #tpu.memory_space<vmem>>, %arg14: memref<128x128xbf16, #tpu.memory_space<vmem>>, %arg15: memref<1x128xf32, #tpu.memory_space<vmem>>, %arg16: memref<128x128xbf16, #tpu.memory_space<vmem>>, %arg17: memref<1x128xf32, #tpu.memory_space<vmem>>, %arg18: memref<128x128xbf16, #tpu.memory_space<vmem>>, %arg19: memref<1x128xf32, #tpu.memory_space<vmem>>, %arg20: memref<128x128xbf16, #tpu.memory_space<vmem>>, %arg21: memref<1x128xf32, #tpu.memory_space<vmem>>, %arg22: memref<8x128xf32, #tpu.memory_space<vmem>>, %arg23: memref<8x128xf32, #tpu.memory_space<vmem>>) attributes {dimension_semantics = [#tpu.dimension_semantics<parallel>], iteration_bounds = array<i64: 1>, scalar_prefetch = 0 : i64, scratch_operands = 0 : i64, tpu.core_type = #tpu.core_type<tc>, window_params = [{transform_indices = @transform_0, window_bounds = array<i64: 8, 128>}, {pipeline_mode = #tpu.pipeline_mode<synchronous>, transform_indices = @transform_1, window_bounds = array<i64: 128, 512>}, {pipeline_mode = #tpu.pipeline_mode<synchronous>, transform_indices = @transform_2, window_bounds = array<i64: 1, 512>}, {pipeline_mode = #tpu.pipeline_mode<synchronous>, transform_indices = @transform_3, window_bounds = array<i64: 512, 256>}, {pipeline_mode = #tpu.pipeline_mode<synchronous>, transform_indices = @transform_4, window_bounds = array<i64: 1, 256>}, {pipeline_mode = #tpu.pipeline_mode<synchronous>, transform_indices = @transform_5, window_bounds = array<i64: 256, 128>}, {pipeline_mode = #tpu.pipeline_mode<synchronous>, transform_indices = @transform_6, window_bounds = array<i64: 1, 128>}, {pipeline_mode = #tpu.pipeline_mode<synchronous>, transform_indices = @transform_7, window_bounds = array<i64: 128, 256>}, {pipeline_mode = #tpu.pipeline_mode<synchronous>, transform_indices = @transform_8, window_bounds = array<i64: 1, 256>}, {pipeline_mode = #tpu.pipeline_mode<synchronous>, transform_indices = @transform_9, window_bounds = array<i64: 256, 512>}, {pipeline_mode = #tpu.pipeline_mode<synchronous>, transform_indices = @transform_10, window_bounds = array<i64: 1, 512>}, {pipeline_mode = #tpu.pipeline_mode<synchronous>, transform_indices = @transform_11, window_bounds = array<i64: 512, 128>}, {pipeline_mode = #tpu.pipeline_mode<synchronous>, transform_indices = @transform_12, window_bounds = array<i64: 1, 128>}, {pipeline_mode = #tpu.pipeline_mode<synchronous>, transform_indices = @transform_13, window_bounds = array<i64: 128, 128>}, {pipeline_mode = #tpu.pipeline_mode<synchronous>, transform_indices = @transform_14, window_bounds = array<i64: 1, 128>}, {pipeline_mode = #tpu.pipeline_mode<synchronous>, transform_indices = @transform_15, window_bounds = array<i64: 128, 128>}, {pipeline_mode = #tpu.pipeline_mode<synchronous>, transform_indices = @transform_16, window_bounds = array<i64: 1, 128>}, {pipeline_mode = #tpu.pipeline_mode<synchronous>, transform_indices = @transform_17, window_bounds = array<i64: 128, 128>}, {pipeline_mode = #tpu.pipeline_mode<synchronous>, transform_indices = @transform_18, window_bounds = array<i64: 1, 128>}, {pipeline_mode = #tpu.pipeline_mode<synchronous>, transform_indices = @transform_19, window_bounds = array<i64: 128, 128>}, {pipeline_mode = #tpu.pipeline_mode<synchronous>, transform_indices = @transform_20, window_bounds = array<i64: 1, 128>}, {transform_indices = @transform_21, window_bounds = array<i64: 8, 128>}, {transform_indices = @transform_22, window_bounds = array<i64: 8, 128>}]} {
    %c0 = arith.constant 0 : index
    %c0_0 = arith.constant 0 : index
    %0 = vector.load %arg1[%c0, %c0_0] : memref<8x128xbf16, #tpu.memory_space<vmem>>, vector<8x128xbf16>
    %c0_1 = arith.constant 0 : index
    %c0_2 = arith.constant 0 : index
    %1 = vector.load %arg2[%c0_1, %c0_2] : memref<128x512xbf16, #tpu.memory_space<vmem>>, vector<128x512xbf16>
    %c0_3 = arith.constant 0 : index
    %c0_4 = arith.constant 0 : index
    %2 = vector.load %arg3[%c0_3, %c0_4] : memref<1x512xf32, #tpu.memory_space<vmem>>, vector<1x512xf32>
    %cst = arith.constant dense<0.000000e+00> : vector<8x512xf32>
    %3 = tpu.matmul %0, %1, %cst {dimension_numbers = #tpu.dot_dimension_numbers<[1], [0], [0], [1], [0, 0, 1, 1], [], []>} : vector<8x128xbf16>, vector<128x512xbf16>, vector<8x512xf32> -> vector<8x512xf32>
    %4 = vector.broadcast %2 : vector<1x512xf32> to vector<8x512xf32>
    %5 = arith.addf %3, %4 : vector<8x512xf32>
    %cst_5 = arith.constant 0.000000e+00 : f32
    %6 = vector.broadcast %cst_5 : f32 to vector<8x512xf32>
    %7 = arith.maximumf %5, %6 : vector<8x512xf32>
    %c0_6 = arith.constant 0 : index
    %c0_7 = arith.constant 0 : index
    %8 = vector.load %arg4[%c0_6, %c0_7] : memref<512x256xbf16, #tpu.memory_space<vmem>>, vector<512x256xbf16>
    %c0_8 = arith.constant 0 : index
    %c0_9 = arith.constant 0 : index
    %9 = vector.load %arg5[%c0_8, %c0_9] : memref<1x256xf32, #tpu.memory_space<vmem>>, vector<1x256xf32>
    %10 = arith.truncf %7 : vector<8x512xf32> to vector<8x512xbf16>
    %cst_10 = arith.constant dense<0.000000e+00> : vector<8x256xf32>
    %11 = tpu.matmul %10, %8, %cst_10 {dimension_numbers = #tpu.dot_dimension_numbers<[1], [0], [0], [1], [0, 0, 1, 1], [], []>} : vector<8x512xbf16>, vector<512x256xbf16>, vector<8x256xf32> -> vector<8x256xf32>
    %12 = vector.broadcast %9 : vector<1x256xf32> to vector<8x256xf32>
    %13 = arith.addf %11, %12 : vector<8x256xf32>
    %cst_11 = arith.constant 0.000000e+00 : f32
    %14 = vector.broadcast %cst_11 : f32 to vector<8x256xf32>
    %15 = arith.maximumf %13, %14 : vector<8x256xf32>
    %c0_12 = arith.constant 0 : index
    %c0_13 = arith.constant 0 : index
    %16 = vector.load %arg6[%c0_12, %c0_13] : memref<256x128xbf16, #tpu.memory_space<vmem>>, vector<256x128xbf16>
    %c0_14 = arith.constant 0 : index
    %c0_15 = arith.constant 0 : index
    %17 = vector.load %arg7[%c0_14, %c0_15] : memref<1x128xf32, #tpu.memory_space<vmem>>, vector<1x128xf32>
    %18 = arith.truncf %15 : vector<8x256xf32> to vector<8x256xbf16>
    %cst_16 = arith.constant dense<0.000000e+00> : vector<8x128xf32>
    %19 = tpu.matmul %18, %16, %cst_16 {dimension_numbers = #tpu.dot_dimension_numbers<[1], [0], [0], [1], [0, 0, 1, 1], [], []>} : vector<8x256xbf16>, vector<256x128xbf16>, vector<8x128xf32> -> vector<8x128xf32>
    %20 = vector.broadcast %17 : vector<1x128xf32> to vector<8x128xf32>
    %21 = arith.addf %19, %20 : vector<8x128xf32>
    %cst_17 = arith.constant 0.000000e+00 : f32
    %22 = vector.broadcast %cst_17 : f32 to vector<8x128xf32>
    %23 = arith.maximumf %21, %22 : vector<8x128xf32>
    %c0_18 = arith.constant 0 : index
    %c0_19 = arith.constant 0 : index
    %24 = vector.load %arg8[%c0_18, %c0_19] : memref<128x256xbf16, #tpu.memory_space<vmem>>, vector<128x256xbf16>
    %c0_20 = arith.constant 0 : index
    %c0_21 = arith.constant 0 : index
    %25 = vector.load %arg9[%c0_20, %c0_21] : memref<1x256xf32, #tpu.memory_space<vmem>>, vector<1x256xf32>
    %26 = arith.truncf %23 : vector<8x128xf32> to vector<8x128xbf16>
    %cst_22 = arith.constant dense<0.000000e+00> : vector<8x256xf32>
    %27 = tpu.matmul %26, %24, %cst_22 {dimension_numbers = #tpu.dot_dimension_numbers<[1], [0], [0], [1], [0, 0, 1, 1], [], []>} : vector<8x128xbf16>, vector<128x256xbf16>, vector<8x256xf32> -> vector<8x256xf32>
    %28 = vector.broadcast %25 : vector<1x256xf32> to vector<8x256xf32>
    %29 = arith.addf %27, %28 : vector<8x256xf32>
    %cst_23 = arith.constant 0.000000e+00 : f32
    %30 = vector.broadcast %cst_23 : f32 to vector<8x256xf32>
    %31 = arith.maximumf %29, %30 : vector<8x256xf32>
    %c0_24 = arith.constant 0 : index
    %c0_25 = arith.constant 0 : index
    %32 = vector.load %arg10[%c0_24, %c0_25] : memref<256x512xbf16, #tpu.memory_space<vmem>>, vector<256x512xbf16>
    %c0_26 = arith.constant 0 : index
    %c0_27 = arith.constant 0 : index
    %33 = vector.load %arg11[%c0_26, %c0_27] : memref<1x512xf32, #tpu.memory_space<vmem>>, vector<1x512xf32>
    %34 = arith.truncf %31 : vector<8x256xf32> to vector<8x256xbf16>
    %cst_28 = arith.constant dense<0.000000e+00> : vector<8x512xf32>
    %35 = tpu.matmul %34, %32, %cst_28 {dimension_numbers = #tpu.dot_dimension_numbers<[1], [0], [0], [1], [0, 0, 1, 1], [], []>} : vector<8x256xbf16>, vector<256x512xbf16>, vector<8x512xf32> -> vector<8x512xf32>
    %36 = vector.broadcast %33 : vector<1x512xf32> to vector<8x512xf32>
    %37 = arith.addf %35, %36 : vector<8x512xf32>
    %cst_29 = arith.constant 0.000000e+00 : f32
    %38 = vector.broadcast %cst_29 : f32 to vector<8x512xf32>
    %39 = arith.maximumf %37, %38 : vector<8x512xf32>
    %c0_30 = arith.constant 0 : index
    %c0_31 = arith.constant 0 : index
    %40 = vector.load %arg12[%c0_30, %c0_31] : memref<512x128xbf16, #tpu.memory_space<vmem>>, vector<512x128xbf16>
    %c0_32 = arith.constant 0 : index
    %c0_33 = arith.constant 0 : index
    %41 = vector.load %arg13[%c0_32, %c0_33] : memref<1x128xf32, #tpu.memory_space<vmem>>, vector<1x128xf32>
    %42 = arith.truncf %39 : vector<8x512xf32> to vector<8x512xbf16>
    %cst_34 = arith.constant dense<0.000000e+00> : vector<8x128xf32>
    %43 = tpu.matmul %42, %40, %cst_34 {dimension_numbers = #tpu.dot_dimension_numbers<[1], [0], [0], [1], [0, 0, 1, 1], [], []>} : vector<8x512xbf16>, vector<512x128xbf16>, vector<8x128xf32> -> vector<8x128xf32>
    %44 = vector.broadcast %41 : vector<1x128xf32> to vector<8x128xf32>
    %45 = arith.addf %43, %44 : vector<8x128xf32>
    %46 = arith.negf %45 : vector<8x128xf32>
    %47 = math.exp %46 : vector<8x128xf32>
    %cst_35 = arith.constant 1.000000e+00 : f32
    %48 = vector.broadcast %cst_35 : f32 to vector<8x128xf32>
    %49 = arith.addf %48, %47 : vector<8x128xf32>
    %50 = arith.divf %48, %49 : vector<8x128xf32>
    %c0_36 = arith.constant 0 : index
    %c0_37 = arith.constant 0 : index
    %51 = vector.load %arg22[%c0_36, %c0_37] : memref<8x128xf32, #tpu.memory_space<vmem>>, vector<8x128xf32>
    tpu.vector_store %arg22[%c0_36, %c0_37], %50 {strides = array<i32>} : memref<8x128xf32, #tpu.memory_space<vmem>>, vector<8x128xf32>,
    %c0_38 = arith.constant 0 : index
    %c0_39 = arith.constant 0 : index
    %52 = vector.load %arg14[%c0_38, %c0_39] : memref<128x128xbf16, #tpu.memory_space<vmem>>, vector<128x128xbf16>
    %c0_40 = arith.constant 0 : index
    %c0_41 = arith.constant 0 : index
    %53 = vector.load %arg15[%c0_40, %c0_41] : memref<1x128xf32, #tpu.memory_space<vmem>>, vector<1x128xf32>
    %54 = arith.truncf %23 : vector<8x128xf32> to vector<8x128xbf16>
    %cst_42 = arith.constant dense<0.000000e+00> : vector<8x128xf32>
    %55 = tpu.matmul %54, %52, %cst_42 {dimension_numbers = #tpu.dot_dimension_numbers<[1], [0], [0], [1], [0, 0, 1, 1], [], []>} : vector<8x128xbf16>, vector<128x128xbf16>, vector<8x128xf32> -> vector<8x128xf32>
    %56 = vector.broadcast %53 : vector<1x128xf32> to vector<8x128xf32>
    %57 = arith.addf %55, %56 : vector<8x128xf32>
    %cst_43 = arith.constant 0.000000e+00 : f32
    %58 = vector.broadcast %cst_43 : f32 to vector<8x128xf32>
    %59 = arith.maximumf %57, %58 : vector<8x128xf32>
    %c0_44 = arith.constant 0 : index
    %c0_45 = arith.constant 0 : index
    %60 = vector.load %arg16[%c0_44, %c0_45] : memref<128x128xbf16, #tpu.memory_space<vmem>>, vector<128x128xbf16>
    %c0_46 = arith.constant 0 : index
    %c0_47 = arith.constant 0 : index
    %61 = vector.load %arg17[%c0_46, %c0_47] : memref<1x128xf32, #tpu.memory_space<vmem>>, vector<1x128xf32>
    %62 = arith.truncf %59 : vector<8x128xf32> to vector<8x128xbf16>
    %cst_48 = arith.constant dense<0.000000e+00> : vector<8x128xf32>
    %63 = tpu.matmul %62, %60, %cst_48 {dimension_numbers = #tpu.dot_dimension_numbers<[1], [0], [0], [1], [0, 0, 1, 1], [], []>} : vector<8x128xbf16>, vector<128x128xbf16>, vector<8x128xf32> -> vector<8x128xf32>
    %64 = vector.broadcast %61 : vector<1x128xf32> to vector<8x128xf32>
    %65 = arith.addf %63, %64 : vector<8x128xf32>
    %cst_49 = arith.constant 0.000000e+00 : f32
    %66 = vector.broadcast %cst_49 : f32 to vector<8x128xf32>
    %67 = arith.maximumf %65, %66 : vector<8x128xf32>
    %c0_50 = arith.constant 0 : index
    %c0_51 = arith.constant 0 : index
    %68 = vector.load %arg18[%c0_50, %c0_51] : memref<128x128xbf16, #tpu.memory_space<vmem>>, vector<128x128xbf16>
    %c0_52 = arith.constant 0 : index
    %c0_53 = arith.constant 0 : index
    %69 = vector.load %arg19[%c0_52, %c0_53] : memref<1x128xf32, #tpu.memory_space<vmem>>, vector<1x128xf32>
    %70 = arith.truncf %67 : vector<8x128xf32> to vector<8x128xbf16>
    %cst_54 = arith.constant dense<0.000000e+00> : vector<8x128xf32>
    %71 = tpu.matmul %70, %68, %cst_54 {dimension_numbers = #tpu.dot_dimension_numbers<[1], [0], [0], [1], [0, 0, 1, 1], [], []>} : vector<8x128xbf16>, vector<128x128xbf16>, vector<8x128xf32> -> vector<8x128xf32>
    %72 = vector.broadcast %69 : vector<1x128xf32> to vector<8x128xf32>
    %73 = arith.addf %71, %72 : vector<8x128xf32>
    %cst_55 = arith.constant 0.000000e+00 : f32
    %74 = vector.broadcast %cst_55 : f32 to vector<8x128xf32>
    %75 = arith.maximumf %73, %74 : vector<8x128xf32>
    %c0_56 = arith.constant 0 : index
    %c0_57 = arith.constant 0 : index
    %76 = vector.load %arg20[%c0_56, %c0_57] : memref<128x128xbf16, #tpu.memory_space<vmem>>, vector<128x128xbf16>
    %c0_58 = arith.constant 0 : index
    %c0_59 = arith.constant 0 : index
    %77 = vector.load %arg21[%c0_58, %c0_59] : memref<1x128xf32, #tpu.memory_space<vmem>>, vector<1x128xf32>
    %78 = arith.truncf %75 : vector<8x128xf32> to vector<8x128xbf16>
    %cst_60 = arith.constant dense<0.000000e+00> : vector<8x128xf32>
    %79 = tpu.matmul %78, %76, %cst_60 {dimension_numbers = #tpu.dot_dimension_numbers<[1], [0], [0], [1], [0, 0, 1, 1], [], []>} : vector<8x128xbf16>, vector<128x128xbf16>, vector<8x128xf32> -> vector<8x128xf32>
    %80 = vector.broadcast %77 : vector<1x128xf32> to vector<8x128xf32>
    %81 = arith.addf %79, %80 : vector<8x128xf32>
    %c0_61 = arith.constant 0 : index
    %c0_62 = arith.constant 0 : index
    %82 = vector.load %arg23[%c0_61, %c0_62] : memref<8x128xf32, #tpu.memory_space<vmem>>, vector<8x128xf32>
    tpu.vector_store %arg23[%c0_61, %c0_62], %81 {strides = array<i32>} : memref<8x128xf32, #tpu.memory_space<vmem>>, vector<8x128xf32>,
    return
  }
  func.func @transform_0(%arg0: i32) -> (i32, i32) {
    %c0_i32 = arith.constant 0 : i32
    %c0_i32_0 = arith.constant 0 : i32
    return %arg0, %c0_i32 : i32, i32
  }
  func.func @transform_1(%arg0: i32) -> (i32, i32) {
    %c0_i32 = arith.constant 0 : i32
    %c0_i32_0 = arith.constant 0 : i32
    %c0_i32_1 = arith.constant 0 : i32
    return %c0_i32, %c0_i32_0 : i32, i32
  }
  func.func @transform_2(%arg0: i32) -> (i32, i32) {
    %c0_i32 = arith.constant 0 : i32
    %c0_i32_0 = arith.constant 0 : i32
    %c0_i32_1 = arith.constant 0 : i32
    return %c0_i32, %c0_i32_0 : i32, i32
  }
  func.func @transform_3(%arg0: i32) -> (i32, i32) {
    %c0_i32 = arith.constant 0 : i32
    %c0_i32_0 = arith.constant 0 : i32
    %c0_i32_1 = arith.constant 0 : i32
    return %c0_i32, %c0_i32_0 : i32, i32
  }
  func.func @transform_4(%arg0: i32) -> (i32, i32) {
    %c0_i32 = arith.constant 0 : i32
    %c0_i32_0 = arith.constant 0 : i32
    %c0_i32_1 = arith.constant 0 : i32
    return %c0_i32, %c0_i32_0 : i32, i32
  }
  func.func @transform_5(%arg0: i32) -> (i32, i32) {
    %c0_i32 = arith.constant 0 : i32
    %c0_i32_0 = arith.constant 0 : i32
    %c0_i32_1 = arith.constant 0 : i32
    return %c0_i32, %c0_i32_0 : i32, i32
  }
  func.func @transform_6(%arg0: i32) -> (i32, i32) {
    %c0_i32 = arith.constant 0 : i32
    %c0_i32_0 = arith.constant 0 : i32
    %c0_i32_1 = arith.constant 0 : i32
    return %c0_i32, %c0_i32_0 : i32, i32
  }
  func.func @transform_7(%arg0: i32) -> (i32, i32) {
    %c0_i32 = arith.constant 0 : i32
    %c0_i32_0 = arith.constant 0 : i32
    %c0_i32_1 = arith.constant 0 : i32
    return %c0_i32, %c0_i32_0 : i32, i32
  }
  func.func @transform_8(%arg0: i32) -> (i32, i32) {
    %c0_i32 = arith.constant 0 : i32
    %c0_i32_0 = arith.constant 0 : i32
    %c0_i32_1 = arith.constant 0 : i32
    return %c0_i32, %c0_i32_0 : i32, i32
  }
  func.func @transform_9(%arg0: i32) -> (i32, i32) {
    %c0_i32 = arith.constant 0 : i32
    %c0_i32_0 = arith.constant 0 : i32
    %c0_i32_1 = arith.constant 0 : i32
    return %c0_i32, %c0_i32_0 : i32, i32
  }
  func.func @transform_10(%arg0: i32) -> (i32, i32) {
    %c0_i32 = arith.constant 0 : i32
    %c0_i32_0 = arith.constant 0 : i32
    %c0_i32_1 = arith.constant 0 : i32
    return %c0_i32, %c0_i32_0 : i32, i32
  }
  func.func @transform_11(%arg0: i32) -> (i32, i32) {
    %c0_i32 = arith.constant 0 : i32
    %c0_i32_0 = arith.constant 0 : i32
    %c0_i32_1 = arith.constant 0 : i32
    return %c0_i32, %c0_i32_0 : i32, i32
  }
  func.func @transform_12(%arg0: i32) -> (i32, i32) {
    %c0_i32 = arith.constant 0 : i32
    %c0_i32_0 = arith.constant 0 : i32
    %c0_i32_1 = arith.constant 0 : i32
    return %c0_i32, %c0_i32_0 : i32, i32
  }
  func.func @transform_13(%arg0: i32) -> (i32, i32) {
    %c0_i32 = arith.constant 0 : i32
    %c0_i32_0 = arith.constant 0 : i32
    %c0_i32_1 = arith.constant 0 : i32
    return %c0_i32, %c0_i32_0 : i32, i32
  }
  func.func @transform_14(%arg0: i32) -> (i32, i32) {
    %c0_i32 = arith.constant 0 : i32
    %c0_i32_0 = arith.constant 0 : i32
    %c0_i32_1 = arith.constant 0 : i32
    return %c0_i32, %c0_i32_0 : i32, i32
  }
  func.func @transform_15(%arg0: i32) -> (i32, i32) {
    %c0_i32 = arith.constant 0 : i32
    %c0_i32_0 = arith.constant 0 : i32
    %c0_i32_1 = arith.constant 0 : i32
    return %c0_i32, %c0_i32_0 : i32, i32
  }
  func.func @transform_16(%arg0: i32) -> (i32, i32) {
    %c0_i32 = arith.constant 0 : i32
    %c0_i32_0 = arith.constant 0 : i32
    %c0_i32_1 = arith.constant 0 : i32
    return %c0_i32, %c0_i32_0 : i32, i32
  }
  func.func @transform_17(%arg0: i32) -> (i32, i32) {
    %c0_i32 = arith.constant 0 : i32
    %c0_i32_0 = arith.constant 0 : i32
    %c0_i32_1 = arith.constant 0 : i32
    return %c0_i32, %c0_i32_0 : i32, i32
  }
  func.func @transform_18(%arg0: i32) -> (i32, i32) {
    %c0_i32 = arith.constant 0 : i32
    %c0_i32_0 = arith.constant 0 : i32
    %c0_i32_1 = arith.constant 0 : i32
    return %c0_i32, %c0_i32_0 : i32, i32
  }
  func.func @transform_19(%arg0: i32) -> (i32, i32) {
    %c0_i32 = arith.constant 0 : i32
    %c0_i32_0 = arith.constant 0 : i32
    %c0_i32_1 = arith.constant 0 : i32
    return %c0_i32, %c0_i32_0 : i32, i32
  }
  func.func @transform_20(%arg0: i32) -> (i32, i32) {
    %c0_i32 = arith.constant 0 : i32
    %c0_i32_0 = arith.constant 0 : i32
    %c0_i32_1 = arith.constant 0 : i32
    return %c0_i32, %c0_i32_0 : i32, i32
  }
  func.func @transform_21(%arg0: i32) -> (i32, i32) {
    %c0_i32 = arith.constant 0 : i32
    %c0_i32_0 = arith.constant 0 : i32
    return %arg0, %c0_i32 : i32, i32
  }
  func.func @transform_22(%arg0: i32) -> (i32, i32) {
    %c0_i32 = arith.constant 0 : i32
    %c0_i32_0 = arith.constant 0 : i32
    return %arg0, %c0_i32 : i32, i32
  }
}

</mosaic_0001>

<llo_original>
// kernel: _lambda_.1
$region0: #{_lambda_.1}
  #allocation0 [shape = 'u32[]', space=smem, size = 0x4, offset = 0x4, fixed_abs, tag = 'smem constant byte address 0x4 - core index']
  #allocation1 [shape = 'u32[144,128]{1,0:T(1,128)}', space=vmem, size = 0x12000, scoped, tag = 'internal scratch']
  %s0 = inlined_call_operand.vmem [shape: bf16[8,128], index: 0, kind: input, shape index: {}]
  %s1 = inlined_call_operand.vmem [shape: bf16[128,512], index: 1, kind: input, shape index: {}]
  %s2 = inlined_call_operand.vmem [shape: f32[1,512], index: 2, kind: input, shape index: {}]
  %s3 = inlined_call_operand.vmem [shape: bf16[512,256], index: 3, kind: input, shape index: {}]
  %s4 = inlined_call_operand.vmem [shape: f32[1,256], index: 4, kind: input, shape index: {}]
  %s5 = inlined_call_operand.vmem [shape: bf16[256,128], index: 5, kind: input, shape index: {}]
  %s6 = inlined_call_operand.vmem [shape: f32[1,128], index: 6, kind: input, shape index: {}]
  %s7 = inlined_call_operand.vmem [shape: bf16[128,256], index: 7, kind: input, shape index: {}]
  %s8 = inlined_call_operand.vmem [shape: f32[1,256], index: 8, kind: input, shape index: {}]
  %s9 = inlined_call_operand.vmem [shape: bf16[256,512], index: 9, kind: input, shape index: {}]
  %s10 = inlined_call_operand.vmem [shape: f32[1,512], index: 10, kind: input, shape index: {}]
  %s11 = inlined_call_operand.vmem [shape: bf16[512,128], index: 11, kind: input, shape index: {}]
  %s12 = inlined_call_operand.vmem [shape: f32[1,128], index: 12, kind: input, shape index: {}]
  %s13 = inlined_call_operand.vmem [shape: bf16[128,128], index: 13, kind: input, shape index: {}]
  %s14 = inlined_call_operand.vmem [shape: f32[1,128], index: 14, kind: input, shape index: {}]
  %s15 = inlined_call_operand.vmem [shape: bf16[128,128], index: 15, kind: input, shape index: {}]
  %s16 = inlined_call_operand.vmem [shape: f32[1,128], index: 16, kind: input, shape index: {}]
  %s17 = inlined_call_operand.vmem [shape: bf16[128,128], index: 17, kind: input, shape index: {}]
  %s18 = inlined_call_operand.vmem [shape: f32[1,128], index: 18, kind: input, shape index: {}]
  %s19 = inlined_call_operand.vmem [shape: bf16[128,128], index: 19, kind: input, shape index: {}]
  %s20 = inlined_call_operand.vmem [shape: f32[1,128], index: 20, kind: input, shape index: {}]
  %s21 = inlined_call_operand.hbm [shape: f32[8,128], index: 21, kind: output, shape index: {0}]
  %s22 = inlined_call_operand.vmem [shape: f32[8,128], index: 22, kind: output, shape index: {1}]
  %23 = xla_tuple %s21, %s22
  %s24 = sld [smem:[#allocation0]]
  $region102: #{_lambda_.1} parent=0
    _
  %s26 = ssub.s32 1, %s24
  %s27 = scalar_select 0, %s26, %s24
  $region1: #{_lambda_.1} parent=0
    #allocation2 [shape = 'u8[4096]{0}', space=vmem, size = 0x1000, scoped, tag = 'output window, operand 0, single buffered']
    #allocation3 [shape = 's32[1]{0}', space=sflag, size = 0x4, scoped, tag = 'scoped memory for _lambda_.1']
    %28 = vsyncpa [#allocation3], 0
    // Predicated region
    $region2: #{_lambda_.1} parent=1 // pred_check
      _
    $region3: #{_lambda_.1} parent=1 // pred_check_branch
      %30 = sbr.rel (0) target = $region5
    $region4: #{_lambda_.1} parent=1 // pred_region
      _
    $region5: #{_lambda_.1} parent=1 // pred_fallthru
      _
    // Predicated region
    $region6: #{_lambda_.1} parent=1 // pred_check
      _
    $region7: #{_lambda_.1} parent=1 // pred_check_branch
      %32 = sbr.rel (0) target = $region9
    $region8: #{_lambda_.1} parent=1 // pred_region
      _
    $region9: #{_lambda_.1} parent=1 // pred_fallthru
      _
    // Predicated region
    $region10: #{_lambda_.1} parent=1 // pred_check
      _
    $region11: #{_lambda_.1} parent=1 // pred_check_branch
      %34 = sbr.rel (0) target = $region13
    $region12: #{_lambda_.1} parent=1 // pred_region
      _
    $region13: #{_lambda_.1} parent=1 // pred_fallthru
      _
    // Predicated region
    $region14: #{_lambda_.1} parent=1 // pred_check
      _
    $region15: #{_lambda_.1} parent=1 // pred_check_branch
      %36 = sbr.rel (0) target = $region17
    $region16: #{_lambda_.1} parent=1 // pred_region
      _
    $region17: #{_lambda_.1} parent=1 // pred_fallthru
      _
    // Predicated region
    $region18: #{_lambda_.1} parent=1 // pred_check
      _
    $region19: #{_lambda_.1} parent=1 // pred_check_branch
      %38 = sbr.rel (0) target = $region21
    $region20: #{_lambda_.1} parent=1 // pred_region
      _
    $region21: #{_lambda_.1} parent=1 // pred_fallthru
      _
    // Predicated region
    $region22: #{_lambda_.1} parent=1 // pred_check
      _
    $region23: #{_lambda_.1} parent=1 // pred_check_branch
      %40 = sbr.rel (0) target = $region25
    $region24: #{_lambda_.1} parent=1 // pred_region
      _
    $region25: #{_lambda_.1} parent=1 // pred_fallthru
      _
    // Predicated region
    $region26: #{_lambda_.1} parent=1 // pred_check
      _
    $region27: #{_lambda_.1} parent=1 // pred_check_branch
      %42 = sbr.rel (0) target = $region29
    $region28: #{_lambda_.1} parent=1 // pred_region
      _
    $region29: #{_lambda_.1} parent=1 // pred_fallthru
      _
    // Predicated region
    $region30: #{_lambda_.1} parent=1 // pred_check
      _
    $region31: #{_lambda_.1} parent=1 // pred_check_branch
      %44 = sbr.rel (0) target = $region33
    $region32: #{_lambda_.1} parent=1 // pred_region
      _
    $region33: #{_lambda_.1} parent=1 // pred_fallthru
      _
    // Predicated region
    $region34: #{_lambda_.1} parent=1 // pred_check
      _
    $region35: #{_lambda_.1} parent=1 // pred_check_branch
      %46 = sbr.rel (0) target = $region37
    $region36: #{_lambda_.1} parent=1 // pred_region
      _
    $region37: #{_lambda_.1} parent=1 // pred_fallthru
      _
    // Predicated region
    $region38: #{_lambda_.1} parent=1 // pred_check
      _
    $region39: #{_lambda_.1} parent=1 // pred_check_branch
      %48 = sbr.rel (0) target = $region41
    $region40: #{_lambda_.1} parent=1 // pred_region
      _
    $region41: #{_lambda_.1} parent=1 // pred_fallthru
      _
    // Predicated region
    $region42: #{_lambda_.1} parent=1 // pred_check
      _
    $region43: #{_lambda_.1} parent=1 // pred_check_branch
      %50 = sbr.rel (0) target = $region45
    $region44: #{_lambda_.1} parent=1 // pred_region
      _
    $region45: #{_lambda_.1} parent=1 // pred_fallthru
      _
    // Predicated region
    $region46: #{_lambda_.1} parent=1 // pred_check
      _
    $region47: #{_lambda_.1} parent=1 // pred_check_branch
      %52 = sbr.rel (0) target = $region49
    $region48: #{_lambda_.1} parent=1 // pred_region
      _
    $region49: #{_lambda_.1} parent=1 // pred_fallthru
      _
    // Predicated region
    $region50: #{_lambda_.1} parent=1 // pred_check
      _
    $region51: #{_lambda_.1} parent=1 // pred_check_branch
      %54 = sbr.rel (0) target = $region53
    $region52: #{_lambda_.1} parent=1 // pred_region
      _
    $region53: #{_lambda_.1} parent=1 // pred_fallthru
      _
    // Predicated region
    $region54: #{_lambda_.1} parent=1 // pred_check
      _
    $region55: #{_lambda_.1} parent=1 // pred_check_branch
      %56 = sbr.rel (0) target = $region57
    $region56: #{_lambda_.1} parent=1 // pred_region
      _
    $region57: #{_lambda_.1} parent=1 // pred_fallthru
      _
    // Predicated region
    $region58: #{_lambda_.1} parent=1 // pred_check
      _
    $region59: #{_lambda_.1} parent=1 // pred_check_branch
      %58 = sbr.rel (0) target = $region61
    $region60: #{_lambda_.1} parent=1 // pred_region
      _
    $region61: #{_lambda_.1} parent=1 // pred_fallthru
      _
    // Predicated region
    $region62: #{_lambda_.1} parent=1 // pred_check
      _
    $region63: #{_lambda_.1} parent=1 // pred_check_branch
      %60 = sbr.rel (0) target = $region65
    $region64: #{_lambda_.1} parent=1 // pred_region
      _
    $region65: #{_lambda_.1} parent=1 // pred_fallthru
      _
    // Predicated region
    $region66: #{_lambda_.1} parent=1 // pred_check
      _
    $region67: #{_lambda_.1} parent=1 // pred_check_branch
      %62 = sbr.rel (0) target = $region69
    $region68: #{_lambda_.1} parent=1 // pred_region
      _
    $region69: #{_lambda_.1} parent=1 // pred_fallthru
      _
    // Predicated region
    $region70: #{_lambda_.1} parent=1 // pred_check
      _
    $region71: #{_lambda_.1} parent=1 // pred_check_branch
      %64 = sbr.rel (0) target = $region73
    $region72: #{_lambda_.1} parent=1 // pred_region
      _
    $region73: #{_lambda_.1} parent=1 // pred_fallthru
      _
    // Predicated region
    $region74: #{_lambda_.1} parent=1 // pred_check
      _
    $region75: #{_lambda_.1} parent=1 // pred_check_branch
      %66 = sbr.rel (0) target = $region77
    $region76: #{_lambda_.1} parent=1 // pred_region
      _
    $region77: #{_lambda_.1} parent=1 // pred_fallthru
      _
    // Predicated region
    $region78: #{_lambda_.1} parent=1 // pred_check
      _
    $region79: #{_lambda_.1} parent=1 // pred_check_branch
      %68 = sbr.rel (0) target = $region81
    $region80: #{_lambda_.1} parent=1 // pred_region
      _
    $region81: #{_lambda_.1} parent=1 // pred_fallthru
      _
    // Predicated region
    $region82: #{_lambda_.1} parent=1 // pred_check
      _
    $region83: #{_lambda_.1} parent=1 // pred_check_branch
      %70 = sbr.rel (0) target = $region85
    $region84: #{_lambda_.1} parent=1 // pred_region
      _
    $region85: #{_lambda_.1} parent=1 // pred_fallthru
      _
    %v72 = vld [vmem:[%s0] sm:$0xf]
    %v73 = vld [vmem:[%s1] sm:$0xff]
    %v74 = vld [vmem:[%s1 + $0x8] sm:$0xff]
    %v75 = vld [vmem:[%s1 + $0x10] sm:$0xff]
    %v76 = vld [vmem:[%s1 + $0x18] sm:$0xff]
    %v77 = vld [vmem:[%s1 + $0x20] sm:$0xff]
    %v78 = vld [vmem:[%s1 + $0x28] sm:$0xff]
    %v79 = vld [vmem:[%s1 + $0x30] sm:$0xff]
    %v80 = vld [vmem:[%s1 + $0x38] sm:$0xff]
    %v81 = vld [vmem:[%s1 + $0x40] sm:$0xff]
    %v82 = vld [vmem:[%s1 + $0x48] sm:$0xff]
    %v83 = vld [vmem:[%s1 + $0x50] sm:$0xff]
    %v84 = vld [vmem:[%s1 + $0x58] sm:$0xff]
    %v85 = vld [vmem:[%s1 + $0x60] sm:$0xff]
    %v86 = vld [vmem:[%s1 + $0x68] sm:$0xff]
    %v87 = vld [vmem:[%s1 + $0x70] sm:$0xff]
    %v88 = vld [vmem:[%s1 + $0x78] sm:$0xff]
    %v89 = vld [vmem:[%s1 + $0x80] sm:$0xff]
    %v90 = vld [vmem:[%s1 + $0x88] sm:$0xff]
    %v91 = vld [vmem:[%s1 + $0x90] sm:$0xff]
    %v92 = vld [vmem:[%s1 + $0x98] sm:$0xff]
    %v93 = vld [vmem:[%s1 + $0xa0] sm:$0xff]
    %v94 = vld [vmem:[%s1 + $0xa8] sm:$0xff]
    %v95 = vld [vmem:[%s1 + $0xb0] sm:$0xff]
    %v96 = vld [vmem:[%s1 + $0xb8] sm:$0xff]
    %v97 = vld [vmem:[%s1 + $0xc0] sm:$0xff]
    %v98 = vld [vmem:[%s1 + $0xc8] sm:$0xff]
    %v99 = vld [vmem:[%s1 + $0xd0] sm:$0xff]
    %v100 = vld [vmem:[%s1 + $0xd8] sm:$0xff]
    %v101 = vld [vmem:[%s1 + $0xe0] sm:$0xff]
    %v102 = vld [vmem:[%s1 + $0xe8] sm:$0xff]
    %v103 = vld [vmem:[%s1 + $0xf0] sm:$0xff]
    %v104 = vld [vmem:[%s1 + $0xf8] sm:$0xff]
    %v105 = vld [vmem:[%s2] sm:$0xf]
    %v107 = vlaneseq
    %v108 = vshrl.u32 %v107, 7
    %v109 = vsub.s32 0, %v108
    %v110 = vrot.slane %v105, %v109
    %v111 = vlaneseq
    %v112 = vshrl.u32 %v111, 7
    %v113 = vsub.s32 1, %v112
    %v114 = vrot.slane %v105, %v113
    %v115 = vlaneseq
    %v116 = vshrl.u32 %v115, 7
    %v117 = vsub.s32 2, %v116
    %v118 = vrot.slane %v105, %v117
    %v119 = vlaneseq
    %v120 = vshrl.u32 %v119, 7
    %v121 = vsub.s32 3, %v120
    %v122 = vrot.slane %v105, %v121
    %v159 = vunpack.c.l.b16 %v73
    %v160 = vunpack.c.h.b16 %v73
    %v161 = vunpack.c.l.b16 %v74
    %v162 = vunpack.c.h.b16 %v74
    %v163 = vunpack.c.l.b16 %v75
    %v164 = vunpack.c.h.b16 %v75
    %v165 = vunpack.c.l.b16 %v76
    %v166 = vunpack.c.h.b16 %v76
    %v167 = vunpack.c.l.b16 %v77
    %v168 = vunpack.c.h.b16 %v77
    %v169 = vunpack.c.l.b16 %v78
    %v170 = vunpack.c.h.b16 %v78
    %v171 = vunpack.c.l.b16 %v79
    %v172 = vunpack.c.h.b16 %v79
    %v173 = vunpack.c.l.b16 %v80
    %v174 = vunpack.c.h.b16 %v80
    %v175 = vunpack.c.l.b16 %v81
    %v176 = vunpack.c.h.b16 %v81
    %v177 = vunpack.c.l.b16 %v82
    %v178 = vunpack.c.h.b16 %v82
    %v179 = vunpack.c.l.b16 %v83
    %v180 = vunpack.c.h.b16 %v83
    %v181 = vunpack.c.l.b16 %v84
    %v182 = vunpack.c.h.b16 %v84
    %v183 = vunpack.c.l.b16 %v85
    %v184 = vunpack.c.h.b16 %v85
    %v185 = vunpack.c.l.b16 %v86
    %v186 = vunpack.c.h.b16 %v86
    %v187 = vunpack.c.l.b16 %v87
    %v188 = vunpack.c.h.b16 %v87
    %v189 = vunpack.c.l.b16 %v88
    %v190 = vunpack.c.h.b16 %v88
    %v191 = vunpack.c.l.b16 %v89
    %v192 = vunpack.c.h.b16 %v89
    %v193 = vunpack.c.l.b16 %v90
    %v194 = vunpack.c.h.b16 %v90
    %v195 = vunpack.c.l.b16 %v91
    %v196 = vunpack.c.h.b16 %v91
    %v197 = vunpack.c.l.b16 %v92
    %v198 = vunpack.c.h.b16 %v92
    %v199 = vunpack.c.l.b16 %v93
    %v200 = vunpack.c.h.b16 %v93
    %v201 = vunpack.c.l.b16 %v94
    %v202 = vunpack.c.h.b16 %v94
    %v203 = vunpack.c.l.b16 %v95
    %v204 = vunpack.c.h.b16 %v95
    %v205 = vunpack.c.l.b16 %v96
    %v206 = vunpack.c.h.b16 %v96
    %v207 = vunpack.c.l.b16 %v97
    %v208 = vunpack.c.h.b16 %v97
    %v209 = vunpack.c.l.b16 %v98
    %v210 = vunpack.c.h.b16 %v98
    %v211 = vunpack.c.l.b16 %v99
    %v212 = vunpack.c.h.b16 %v99
    %v213 = vunpack.c.l.b16 %v100
    %v214 = vunpack.c.h.b16 %v100
    %v215 = vunpack.c.l.b16 %v101
    %v216 = vunpack.c.h.b16 %v101
    %v217 = vunpack.c.l.b16 %v102
    %v218 = vunpack.c.h.b16 %v102
    %v219 = vunpack.c.l.b16 %v103
    %v220 = vunpack.c.h.b16 %v103
    %v221 = vunpack.c.l.b16 %v104
    %v222 = vunpack.c.h.b16 %v104
    %v223 = vpack.c.b16 %v163, %v159
    %v224 = vpack.c.b16 %v164, %v160
    %v225 = vpack.c.b16 %v165, %v161
    %v226 = vpack.c.b16 %v166, %v162
    %v227 = vpack.c.b16 %v171, %v167
    %v228 = vpack.c.b16 %v172, %v168
    %v229 = vpack.c.b16 %v173, %v169
    %v230 = vpack.c.b16 %v174, %v170
    %v231 = vpack.c.b16 %v179, %v175
    %v232 = vpack.c.b16 %v180, %v176
    %v233 = vpack.c.b16 %v181, %v177
    %v234 = vpack.c.b16 %v182, %v178
    %v235 = vpack.c.b16 %v187, %v183
    %v236 = vpack.c.b16 %v188, %v184
    %v237 = vpack.c.b16 %v189, %v185
    %v238 = vpack.c.b16 %v190, %v186
    %v239 = vpack.c.b16 %v195, %v191
    %v240 = vpack.c.b16 %v196, %v192
    %v241 = vpack.c.b16 %v197, %v193
    %v242 = vpack.c.b16 %v198, %v194
    %v243 = vpack.c.b16 %v203, %v199
    %v244 = vpack.c.b16 %v204, %v200
    %v245 = vpack.c.b16 %v205, %v201
    %v246 = vpack.c.b16 %v206, %v202
    %v247 = vpack.c.b16 %v211, %v207
    %v248 = vpack.c.b16 %v212, %v208
    %v249 = vpack.c.b16 %v213, %v209
    %v250 = vpack.c.b16 %v214, %v210
    %v251 = vpack.c.b16 %v219, %v215
    %v252 = vpack.c.b16 %v220, %v216
    %v253 = vpack.c.b16 %v221, %v217
    %v254 = vpack.c.b16 %v222, %v218
    %287 = vmatprep.subr.bf16.mxu0 %v224
    %288 = vmatpush1.bf16.msra.mxu0 %v223
    %289 = vmatprep.subr.bf16.mxu0 %v228
    %290 = vmatpush1.bf16.msra.mxu0 %v227
    %291 = vmatprep.subr.bf16.mxu0 %v232
    %292 = vmatpush1.bf16.msra.mxu0 %v231
    %293 = vmatprep.subr.bf16.mxu0 %v236
    %294 = vmatpush1.bf16.msra.mxu0 %v235
    %295 = vmatprep.subr.bf16.mxu0 %v240
    %296 = vmatpush1.bf16.msra.mxu0 %v239
    %297 = vmatprep.subr.bf16.mxu0 %v244
    %298 = vmatpush1.bf16.msra.mxu0 %v243
    %299 = vmatprep.subr.bf16.mxu0 %v248
    %300 = vmatpush1.bf16.msra.mxu0 %v247
    %301 = vmatprep.subr.bf16.mxu0 %v252
    %302 = vmatpush1.bf16.msra.mxu0 %v251
    %303 = vmatprep.subr.bf16.mxu0 0
    %304 = vmatpush1.bf16.msra.mxu0 0
    %305 = vmatprep.subr.bf16.mxu0 0
    %306 = vmatpush1.bf16.msra.mxu0 0
    %307 = vmatprep.subr.bf16.mxu0 0
    %308 = vmatpush1.bf16.msra.mxu0 0
    %309 = vmatprep.subr.bf16.mxu0 0
    %310 = vmatpush1.bf16.msra.mxu0 0
    %311 = vmatprep.subr.bf16.mxu0 0
    %312 = vmatpush1.bf16.msra.mxu0 0
    %313 = vmatprep.subr.bf16.mxu0 0
    %314 = vmatpush1.bf16.msra.mxu0 0
    %315 = vmatprep.subr.bf16.mxu0 0
    %316 = vmatpush1.bf16.msra.mxu0 0
    %317 = vmatprep.subr.bf16.mxu0 0
    %318 = vmatpush1.bf16.msra.mxu0 0
    %319 = vmatprep.mubr.bf16.mxu0 0
    %320 = vmatmul.mubr.bf16.gmra.mrb[0].mxu0 %v72
    %v321 = vpop.f32.mrb[0].mxu0
    %v322 = vadd.f32 %v110, %v321
    %v323 = vpop.f32.mrb[0].mxu0
    %v324 = vadd.f32 %v114, %v323
    %v325 = vpop.f32.mrb[0].mxu0
    %v326 = vpop.f32.mrb[0].mxu0
    %327 = vdwg.mxu0
    %328 = vmatprep.subr.bf16.mxu0 %v226
    %329 = vmatpush1.bf16.msra.mxu0 %v225
    %330 = vmatprep.subr.bf16.mxu0 %v230
    %331 = vmatpush1.bf16.msra.mxu0 %v229
    %332 = vmatprep.subr.bf16.mxu0 %v234
    %333 = vmatpush1.bf16.msra.mxu0 %v233
    %334 = vmatprep.subr.bf16.mxu0 %v238
    %335 = vmatpush1.bf16.msra.mxu0 %v237
    %336 = vmatprep.subr.bf16.mxu0 %v242
    %337 = vmatpush1.bf16.msra.mxu0 %v241
    %338 = vmatprep.subr.bf16.mxu0 %v246
    %339 = vmatpush1.bf16.msra.mxu0 %v245
    %340 = vmatprep.subr.bf16.mxu0 %v250
    %341 = vmatpush1.bf16.msra.mxu0 %v249
    %342 = vmatprep.subr.bf16.mxu0 %v254
    %343 = vmatpush1.bf16.msra.mxu0 %v253
    %344 = vmatprep.subr.bf16.mxu0 0
    %345 = vmatpush1.bf16.msra.mxu0 0
    %346 = vmatprep.subr.bf16.mxu0 0
    %347 = vmatpush1.bf16.msra.mxu0 0
    %348 = vmatprep.subr.bf16.mxu0 0
    %349 = vmatpush1.bf16.msra.mxu0 0
    %350 = vmatprep.subr.bf16.mxu0 0
    %351 = vmatpush1.bf16.msra.mxu0 0
    %352 = vmatprep.subr.bf16.mxu0 0
    %353 = vmatpush1.bf16.msra.mxu0 0
    %354 = vmatprep.subr.bf16.mxu0 0
    %355 = vmatpush1.bf16.msra.mxu0 0
    %356 = vmatprep.subr.bf16.mxu0 0
    %357 = vmatpush1.bf16.msra.mxu0 0
    %358 = vmatprep.subr.bf16.mxu0 0
    %359 = vmatpush1.bf16.msra.mxu0 0
    %360 = vmatprep.mubr.bf16.mxu0 0
    %361 = vmatmul.mubr.bf16.gmra.mrb[0].mxu0 %v72
    %v362 = vpop.f32.mrb[0].mxu0
    %v363 = vadd.f32 %v118, %v362
    %v364 = vpop.f32.mrb[0].mxu0
    %v365 = vadd.f32 %v122, %v364
    %v366 = vpop.f32.mrb[0].mxu0
    %v367 = vpop.f32.mrb[0].mxu0
    %368 = vdwg.mxu0
    %v369 = vmax.f32 %v322, 0.0
    %v370 = vmax.f32 %v324, 0.0
    %v371 = vmax.f32 %v363, 0.0
    %v372 = vmax.f32 %v365, 0.0
    %v373 = vld [vmem:[%s3] sm:$0xff]
    %v374 = vld [vmem:[%s3 + $0x8] sm:$0xff]
    %v375 = vld [vmem:[%s3 + $0x10] sm:$0xff]
    %v376 = vld [vmem:[%s3 + $0x18] sm:$0xff]
    %v377 = vld [vmem:[%s3 + $0x20] sm:$0xff]
    %v378 = vld [vmem:[%s3 + $0x28] sm:$0xff]
    %v379 = vld [vmem:[%s3 + $0x30] sm:$0xff]
    %v380 = vld [vmem:[%s3 + $0x38] sm:$0xff]
    %v381 = vld [vmem:[%s3 + $0x40] sm:$0xff]
    %v382 = vld [vmem:[%s3 + $0x48] sm:$0xff]
    %v383 = vld [vmem:[%s3 + $0x50] sm:$0xff]
    %v384 = vld [vmem:[%s3 + $0x58] sm:$0xff]
    %v385 = vld [vmem:[%s3 + $0x60] sm:$0xff]
    %v386 = vld [vmem:[%s3 + $0x68] sm:$0xff]
    %v387 = vld [vmem:[%s3 + $0x70] sm:$0xff]
    %v388 = vld [vmem:[%s3 + $0x78] sm:$0xff]
    %v389 = vld [vmem:[%s3 + $0x80] sm:$0xff]
    %v390 = vld [vmem:[%s3 + $0x88] sm:$0xff]
    %v391 = vld [vmem:[%s3 + $0x90] sm:$0xff]
    %v392 = vld [vmem:[%s3 + $0x98] sm:$0xff]
    %v393 = vld [vmem:[%s3 + $0xa0] sm:$0xff]
    %v394 = vld [vmem:[%s3 + $0xa8] sm:$0xff]
    %v395 = vld [vmem:[%s3 + $0xb0] sm:$0xff]
    %v396 = vld [vmem:[%s3 + $0xb8] sm:$0xff]
    %v397 = vld [vmem:[%s3 + $0xc0] sm:$0xff]
    %v398 = vld [vmem:[%s3 + $0xc8] sm:$0xff]
    %v399 = vld [vmem:[%s3 + $0xd0] sm:$0xff]
    %v400 = vld [vmem:[%s3 + $0xd8] sm:$0xff]
    %v401 = vld [vmem:[%s3 + $0xe0] sm:$0xff]
    %v402 = vld [vmem:[%s3 + $0xe8] sm:$0xff]
    %v403 = vld [vmem:[%s3 + $0xf0] sm:$0xff]
    %v404 = vld [vmem:[%s3 + $0xf8] sm:$0xff]
    %v405 = vld [vmem:[%s3 + $0x100] sm:$0xff]
    %v406 = vld [vmem:[%s3 + $0x108] sm:$0xff]
    %v407 = vld [vmem:[%s3 + $0x110] sm:$0xff]
    %v408 = vld [vmem:[%s3 + $0x118] sm:$0xff]
    %v409 = vld [vmem:[%s3 + $0x120] sm:$0xff]
    %v410 = vld [vmem:[%s3 + $0x128] sm:$0xff]
    %v411 = vld [vmem:[%s3 + $0x130] sm:$0xff]
    %v412 = vld [vmem:[%s3 + $0x138] sm:$0xff]
    %v413 = vld [vmem:[%s3 + $0x140] sm:$0xff]
    %v414 = vld [vmem:[%s3 + $0x148] sm:$0xff]
    %v415 = vld [vmem:[%s3 + $0x150] sm:$0xff]
    %v416 = vld [vmem:[%s3 + $0x158] sm:$0xff]
    %v417 = vld [vmem:[%s3 + $0x160] sm:$0xff]
    %v418 = vld [vmem:[%s3 + $0x168] sm:$0xff]
    %v419 = vld [vmem:[%s3 + $0x170] sm:$0xff]
    %v420 = vld [vmem:[%s3 + $0x178] sm:$0xff]
    %v421 = vld [vmem:[%s3 + $0x180] sm:$0xff]
    %v422 = vld [vmem:[%s3 + $0x188] sm:$0xff]
    %v423 = vld [vmem:[%s3 + $0x190] sm:$0xff]
    %v424 = vld [vmem:[%s3 + $0x198] sm:$0xff]
    %v425 = vld [vmem:[%s3 + $0x1a0] sm:$0xff]
    %v426 = vld [vmem:[%s3 + $0x1a8] sm:$0xff]
    %v427 = vld [vmem:[%s3 + $0x1b0] sm:$0xff]
    %v428 = vld [vmem:[%s3 + $0x1b8] sm:$0xff]
    %v429 = vld [vmem:[%s3 + $0x1c0] sm:$0xff]
    %v430 = vld [vmem:[%s3 + $0x1c8] sm:$0xff]
    %v431 = vld [vmem:[%s3 + $0x1d0] sm:$0xff]
    %v432 = vld [vmem:[%s3 + $0x1d8] sm:$0xff]
    %v433 = vld [vmem:[%s3 + $0x1e0] sm:$0xff]
    %v434 = vld [vmem:[%s3 + $0x1e8] sm:$0xff]
    %v435 = vld [vmem:[%s3 + $0x1f0] sm:$0xff]
    %v436 = vld [vmem:[%s3 + $0x1f8] sm:$0xff]
    %v437 = vld [vmem:[%s4] sm:$0x3]
    %v438 = vpack.c.bf16 %v369, %v369
    %v439 = vpack.c.bf16 %v370, %v370
    %v440 = vpack.c.bf16 %v371, %v371
    %v441 = vpack.c.bf16 %v372, %v372
    %v443 = vlaneseq
    %v444 = vshrl.u32 %v443, 7
    %v445 = vsub.s32 0, %v444
    %v446 = vrot.slane %v437, %v445
    %v447 = vlaneseq
    %v448 = vshrl.u32 %v447, 7
    %v449 = vsub.s32 1, %v448
    %v450 = vrot.slane %v437, %v449
    %v517 = vunpack.c.l.b16 %v373
    %v518 = vunpack.c.h.b16 %v373
    %v519 = vunpack.c.l.b16 %v374
    %v520 = vunpack.c.h.b16 %v374
    %v521 = vunpack.c.l.b16 %v375
    %v522 = vunpack.c.h.b16 %v375
    %v523 = vunpack.c.l.b16 %v376
    %v524 = vunpack.c.h.b16 %v376
    %v525 = vunpack.c.l.b16 %v377
    %v526 = vunpack.c.h.b16 %v377
    %v527 = vunpack.c.l.b16 %v378
    %v528 = vunpack.c.h.b16 %v378
    %v529 = vunpack.c.l.b16 %v379
    %v530 = vunpack.c.h.b16 %v379
    %v531 = vunpack.c.l.b16 %v380
    %v532 = vunpack.c.h.b16 %v380
    %v533 = vunpack.c.l.b16 %v381
    %v534 = vunpack.c.h.b16 %v381
    %v535 = vunpack.c.l.b16 %v382
    %v536 = vunpack.c.h.b16 %v382
    %v537 = vunpack.c.l.b16 %v383
    %v538 = vunpack.c.h.b16 %v383
    %v539 = vunpack.c.l.b16 %v384
    %v540 = vunpack.c.h.b16 %v384
    %v541 = vunpack.c.l.b16 %v385
    %v542 = vunpack.c.h.b16 %v385
    %v543 = vunpack.c.l.b16 %v386
    %v544 = vunpack.c.h.b16 %v386
    %v545 = vunpack.c.l.b16 %v387
    %v546 = vunpack.c.h.b16 %v387
    %v547 = vunpack.c.l.b16 %v388
    %v548 = vunpack.c.h.b16 %v388
    %v549 = vunpack.c.l.b16 %v389
    %v550 = vunpack.c.h.b16 %v389
    %v551 = vunpack.c.l.b16 %v390
    %v552 = vunpack.c.h.b16 %v390
    %v553 = vunpack.c.l.b16 %v391
    %v554 = vunpack.c.h.b16 %v391
    %v555 = vunpack.c.l.b16 %v392
    %v556 = vunpack.c.h.b16 %v392
    %v557 = vunpack.c.l.b16 %v393
    %v558 = vunpack.c.h.b16 %v393
    %v559 = vunpack.c.l.b16 %v394
    %v560 = vunpack.c.h.b16 %v394
    %v561 = vunpack.c.l.b16 %v395
    %v562 = vunpack.c.h.b16 %v395
    %v563 = vunpack.c.l.b16 %v396
    %v564 = vunpack.c.h.b16 %v396
    %v565 = vunpack.c.l.b16 %v397
    %v566 = vunpack.c.h.b16 %v397
    %v567 = vunpack.c.l.b16 %v398
    %v568 = vunpack.c.h.b16 %v398
    %v569 = vunpack.c.l.b16 %v399
    %v570 = vunpack.c.h.b16 %v399
    %v571 = vunpack.c.l.b16 %v400
    %v572 = vunpack.c.h.b16 %v400
    %v573 = vunpack.c.l.b16 %v401
    %v574 = vunpack.c.h.b16 %v401
    %v575 = vunpack.c.l.b16 %v402
    %v576 = vunpack.c.h.b16 %v402
    %v577 = vunpack.c.l.b16 %v403
    %v578 = vunpack.c.h.b16 %v403
    %v579 = vunpack.c.l.b16 %v404
    %v580 = vunpack.c.h.b16 %v404
    %v581 = vunpack.c.l.b16 %v405
    %v582 = vunpack.c.h.b16 %v405
    %v583 = vunpack.c.l.b16 %v406
    %v584 = vunpack.c.h.b16 %v406
    %v585 = vunpack.c.l.b16 %v407
    %v586 = vunpack.c.h.b16 %v407
    %v587 = vunpack.c.l.b16 %v408
    %v588 = vunpack.c.h.b16 %v408
    %v589 = vunpack.c.l.b16 %v409
    %v590 = vunpack.c.h.b16 %v409
    %v591 = vunpack.c.l.b16 %v410
    %v592 = vunpack.c.h.b16 %v410
    %v593 = vunpack.c.l.b16 %v411
    %v594 = vunpack.c.h.b16 %v411
    %v595 = vunpack.c.l.b16 %v412
    %v596 = vunpack.c.h.b16 %v412
    %v597 = vunpack.c.l.b16 %v413
    %v598 = vunpack.c.h.b16 %v413
    %v599 = vunpack.c.l.b16 %v414
    %v600 = vunpack.c.h.b16 %v414
    %v601 = vunpack.c.l.b16 %v415
    %v602 = vunpack.c.h.b16 %v415
    %v603 = vunpack.c.l.b16 %v416
    %v604 = vunpack.c.h.b16 %v416
    %v605 = vunpack.c.l.b16 %v417
    %v606 = vunpack.c.h.b16 %v417
    %v607 = vunpack.c.l.b16 %v418
    %v608 = vunpack.c.h.b16 %v418
    %v609 = vunpack.c.l.b16 %v419
    %v610 = vunpack.c.h.b16 %v419
    %v611 = vunpack.c.l.b16 %v420
    %v612 = vunpack.c.h.b16 %v420
    %v613 = vunpack.c.l.b16 %v421
    %v614 = vunpack.c.h.b16 %v421
    %v615 = vunpack.c.l.b16 %v422
    %v616 = vunpack.c.h.b16 %v422
    %v617 = vunpack.c.l.b16 %v423
    %v618 = vunpack.c.h.b16 %v423
    %v619 = vunpack.c.l.b16 %v424
    %v620 = vunpack.c.h.b16 %v424
    %v621 = vunpack.c.l.b16 %v425
    %v622 = vunpack.c.h.b16 %v425
    %v623 = vunpack.c.l.b16 %v426
    %v624 = vunpack.c.h.b16 %v426
    %v625 = vunpack.c.l.b16 %v427
    %v626 = vunpack.c.h.b16 %v427
    %v627 = vunpack.c.l.b16 %v428
    %v628 = vunpack.c.h.b16 %v428
    %v629 = vunpack.c.l.b16 %v429
    %v630 = vunpack.c.h.b16 %v429
    %v631 = vunpack.c.l.b16 %v430
    %v632 = vunpack.c.h.b16 %v430
    %v633 = vunpack.c.l.b16 %v431
    %v634 = vunpack.c.h.b16 %v431
    %v635 = vunpack.c.l.b16 %v432
    %v636 = vunpack.c.h.b16 %v432
    %v637 = vunpack.c.l.b16 %v433
    %v638 = vunpack.c.h.b16 %v433
    %v639 = vunpack.c.l.b16 %v434
    %v640 = vunpack.c.h.b16 %v434
    %v641 = vunpack.c.l.b16 %v435
    %v642 = vunpack.c.h.b16 %v435
    %v643 = vunpack.c.l.b16 %v436
    %v644 = vunpack.c.h.b16 %v436
    %v645 = vpack.c.b16 %v519, %v517
    %v646 = vpack.c.b16 %v520, %v518
    %v647 = vpack.c.b16 %v523, %v521
    %v648 = vpack.c.b16 %v524, %v522
    %v649 = vpack.c.b16 %v527, %v525
    %v650 = vpack.c.b16 %v528, %v526
    %v651 = vpack.c.b16 %v531, %v529
    %v652 = vpack.c.b16 %v532, %v530
    %v653 = vpack.c.b16 %v535, %v533
    %v654 = vpack.c.b16 %v536, %v534
    %v655 = vpack.c.b16 %v539, %v537
    %v656 = vpack.c.b16 %v540, %v538
    %v657 = vpack.c.b16 %v543, %v541
    %v658 = vpack.c.b16 %v544, %v542
    %v659 = vpack.c.b16 %v547, %v545
    %v660 = vpack.c.b16 %v548, %v546
    %v661 = vpack.c.b16 %v551, %v549
    %v662 = vpack.c.b16 %v552, %v550
    %v663 = vpack.c.b16 %v555, %v553
    %v664 = vpack.c.b16 %v556, %v554
    %v665 = vpack.c.b16 %v559, %v557
    %v666 = vpack.c.b16 %v560, %v558
    %v667 = vpack.c.b16 %v563, %v561
    %v668 = vpack.c.b16 %v564, %v562
    %v669 = vpack.c.b16 %v567, %v565
    %v670 = vpack.c.b16 %v568, %v566
    %v671 = vpack.c.b16 %v571, %v569
    %v672 = vpack.c.b16 %v572, %v570
    %v673 = vpack.c.b16 %v575, %v573
    %v674 = vpack.c.b16 %v576, %v574
    %v675 = vpack.c.b16 %v579, %v577
    %v676 = vpack.c.b16 %v580, %v578
    %v677 = vpack.c.b16 %v583, %v581
    %v678 = vpack.c.b16 %v584, %v582
    %v679 = vpack.c.b16 %v587, %v585
    %v680 = vpack.c.b16 %v588, %v586
    %v681 = vpack.c.b16 %v591, %v589
    %v682 = vpack.c.b16 %v592, %v590
    %v683 = vpack.c.b16 %v595, %v593
    %v684 = vpack.c.b16 %v596, %v594
    %v685 = vpack.c.b16 %v599, %v597
    %v686 = vpack.c.b16 %v600, %v598
    %v687 = vpack.c.b16 %v603, %v601
    %v688 = vpack.c.b16 %v604, %v602
    %v689 = vpack.c.b16 %v607, %v605
    %v690 = vpack.c.b16 %v608, %v606
    %v691 = vpack.c.b16 %v611, %v609
    %v692 = vpack.c.b16 %v612, %v610
    %v693 = vpack.c.b16 %v615, %v613
    %v694 = vpack.c.b16 %v616, %v614
    %v695 = vpack.c.b16 %v619, %v617
    %v696 = vpack.c.b16 %v620, %v618
    %v697 = vpack.c.b16 %v623, %v621
    %v698 = vpack.c.b16 %v624, %v622
    %v699 = vpack.c.b16 %v627, %v625
    %v700 = vpack.c.b16 %v628, %v626
    %v701 = vpack.c.b16 %v631, %v629
    %v702 = vpack.c.b16 %v632, %v630
    %v703 = vpack.c.b16 %v635, %v633
    %v704 = vpack.c.b16 %v636, %v634
    %v705 = vpack.c.b16 %v639, %v637
    %v706 = vpack.c.b16 %v640, %v638
    %v707 = vpack.c.b16 %v643, %v641
    %v708 = vpack.c.b16 %v644, %v642
    %773 = vmatprep.subr.bf16.mxu0 %v646
    %774 = vmatpush1.bf16.msra.mxu0 %v645
    %775 = vmatprep.subr.bf16.mxu0 %v648
    %776 = vmatpush1.bf16.msra.mxu0 %v647
    %777 = vmatprep.subr.bf16.mxu0 %v650
    %778 = vmatpush1.bf16.msra.mxu0 %v649
    %779 = vmatprep.subr.bf16.mxu0 %v652
    %780 = vmatpush1.bf16.msra.mxu0 %v651
    %781 = vmatprep.subr.bf16.mxu0 %v654
    %782 = vmatpush1.bf16.msra.mxu0 %v653
    %783 = vmatprep.subr.bf16.mxu0 %v656
    %784 = vmatpush1.bf16.msra.mxu0 %v655
    %785 = vmatprep.subr.bf16.mxu0 %v658
    %786 = vmatpush1.bf16.msra.mxu0 %v657
    %787 = vmatprep.subr.bf16.mxu0 %v660
    %788 = vmatpush1.bf16.msra.mxu0 %v659
    %789 = vmatprep.subr.bf16.mxu0 %v662
    %790 = vmatpush1.bf16.msra.mxu0 %v661
    %791 = vmatprep.subr.bf16.mxu0 %v664
    %792 = vmatpush1.bf16.msra.mxu0 %v663
    %793 = vmatprep.subr.bf16.mxu0 %v666
    %794 = vmatpush1.bf16.msra.mxu0 %v665
    %795 = vmatprep.subr.bf16.mxu0 %v668
    %796 = vmatpush1.bf16.msra.mxu0 %v667
    %797 = vmatprep.subr.bf16.mxu0 %v670
    %798 = vmatpush1.bf16.msra.mxu0 %v669
    %799 = vmatprep.subr.bf16.mxu0 %v672
    %800 = vmatpush1.bf16.msra.mxu0 %v671
    %801 = vmatprep.subr.bf16.mxu0 %v674
    %802 = vmatpush1.bf16.msra.mxu0 %v673
    %803 = vmatprep.subr.bf16.mxu0 %v676
    %804 = vmatpush1.bf16.msra.mxu0 %v675
    %805 = vmatprep.mubr.bf16.mxu0 %v439
    %806 = vmatmul.mubr.bf16.gmra.mrb[0].mxu0 %v438
    %v807 = vpop.f32.mrb[0].mxu0
    %v808 = vadd.f32 %v446, %v807
    %v809 = vpop.f32.mrb[0].mxu0
    %v810 = vadd.f32 %v450, %v809
    %v811 = vpop.f32.mrb[0].mxu0
    %v812 = vpop.f32.mrb[0].mxu0
    %813 = vdwg.mxu0
    %814 = vmatprep.subr.bf16.mxu0 %v678
    %815 = vmatpush1.bf16.msra.mxu0 %v677
    %816 = vmatprep.subr.bf16.mxu0 %v680
    %817 = vmatpush1.bf16.msra.mxu0 %v679
    %818 = vmatprep.subr.bf16.mxu0 %v682
    %819 = vmatpush1.bf16.msra.mxu0 %v681
    %820 = vmatprep.subr.bf16.mxu0 %v684
    %821 = vmatpush1.bf16.msra.mxu0 %v683
    %822 = vmatprep.subr.bf16.mxu0 %v686
    %823 = vmatpush1.bf16.msra.mxu0 %v685
    %824 = vmatprep.subr.bf16.mxu0 %v688
    %825 = vmatpush1.bf16.msra.mxu0 %v687
    %826 = vmatprep.subr.bf16.mxu0 %v690
    %827 = vmatpush1.bf16.msra.mxu0 %v689
    %828 = vmatprep.subr.bf16.mxu0 %v692
    %829 = vmatpush1.bf16.msra.mxu0 %v691
    %830 = vmatprep.subr.bf16.mxu0 %v694
    %831 = vmatpush1.bf16.msra.mxu0 %v693
    %832 = vmatprep.subr.bf16.mxu0 %v696
    %833 = vmatpush1.bf16.msra.mxu0 %v695
    %834 = vmatprep.subr.bf16.mxu0 %v698
    %835 = vmatpush1.bf16.msra.mxu0 %v697
    %836 = vmatprep.subr.bf16.mxu0 %v700
    %837 = vmatpush1.bf16.msra.mxu0 %v699
    %838 = vmatprep.subr.bf16.mxu0 %v702
    %839 = vmatpush1.bf16.msra.mxu0 %v701
    %840 = vmatprep.subr.bf16.mxu0 %v704
    %841 = vmatpush1.bf16.msra.mxu0 %v703
    %842 = vmatprep.subr.bf16.mxu0 %v706
    %843 = vmatpush1.bf16.msra.mxu0 %v705
    %844 = vmatprep.subr.bf16.mxu0 %v708
    %845 = vmatpush1.bf16.msra.mxu0 %v707
    %846 = vmatprep.mubr.bf16.mxu0 %v441
    %847 = vmatmul.mubr.bf16.gmra.mrb[0].mxu0 %v440
    %v848 = vpop.f32.mrb[0].mxu0
    %v849 = vadd.f32 %v808, %v848
    %v850 = vpop.f32.mrb[0].mxu0
    %v851 = vadd.f32 %v810, %v850
    %v852 = vpop.f32.mrb[0].mxu0
    %v853 = vpop.f32.mrb[0].mxu0
    %854 = vdwg.mxu0
    %v855 = vmax.f32 %v849, 0.0
    %v856 = vmax.f32 %v851, 0.0
    %v857 = vld [vmem:[%s5] sm:$0xf]
    %v858 = vld [vmem:[%s5 + $0x4] sm:$0xf]
    %v859 = vld [vmem:[%s5 + $0x8] sm:$0xf]
    %v860 = vld [vmem:[%s5 + $0xc] sm:$0xf]
    %v861 = vld [vmem:[%s5 + $0x10] sm:$0xf]
    %v862 = vld [vmem:[%s5 + $0x14] sm:$0xf]
    %v863 = vld [vmem:[%s5 + $0x18] sm:$0xf]
    %v864 = vld [vmem:[%s5 + $0x1c] sm:$0xf]
    %v865 = vld [vmem:[%s5 + $0x20] sm:$0xf]
    %v866 = vld [vmem:[%s5 + $0x24] sm:$0xf]
    %v867 = vld [vmem:[%s5 + $0x28] sm:$0xf]
    %v868 = vld [vmem:[%s5 + $0x2c] sm:$0xf]
    %v869 = vld [vmem:[%s5 + $0x30] sm:$0xf]
    %v870 = vld [vmem:[%s5 + $0x34] sm:$0xf]
    %v871 = vld [vmem:[%s5 + $0x38] sm:$0xf]
    %v872 = vld [vmem:[%s5 + $0x3c] sm:$0xf]
    %v873 = vld [vmem:[%s5 + $0x40] sm:$0xf]
    %v874 = vld [vmem:[%s5 + $0x44] sm:$0xf]
    %v875 = vld [vmem:[%s5 + $0x48] sm:$0xf]
    %v876 = vld [vmem:[%s5 + $0x4c] sm:$0xf]
    %v877 = vld [vmem:[%s5 + $0x50] sm:$0xf]
    %v878 = vld [vmem:[%s5 + $0x54] sm:$0xf]
    %v879 = vld [vmem:[%s5 + $0x58] sm:$0xf]
    %v880 = vld [vmem:[%s5 + $0x5c] sm:$0xf]
    %v881 = vld [vmem:[%s5 + $0x60] sm:$0xf]
    %v882 = vld [vmem:[%s5 + $0x64] sm:$0xf]
    %v883 = vld [vmem:[%s5 + $0x68] sm:$0xf]
    %v884 = vld [vmem:[%s5 + $0x6c] sm:$0xf]
    %v885 = vld [vmem:[%s5 + $0x70] sm:$0xf]
    %v886 = vld [vmem:[%s5 + $0x74] sm:$0xf]
    %v887 = vld [vmem:[%s5 + $0x78] sm:$0xf]
    %v888 = vld [vmem:[%s5 + $0x7c] sm:$0xf]
    %v889 = vld [vmem:[%s6] sm:$0x1]
    %v890 = vpack.c.bf16 %v855, %v855
    %v891 = vpack.c.bf16 %v856, %v856
    %v893 = vlaneseq
    %v894 = vshrl.u32 %v893, 7
    %v895 = vsub.s32 0, %v894
    %v896 = vrot.slane %v889, %v895
    %v930 = vunpack.c.l.b16 %v857
    %v931 = vunpack.c.l.b16 %v858
    %v932 = vunpack.c.l.b16 %v859
    %v933 = vunpack.c.l.b16 %v860
    %v934 = vunpack.c.l.b16 %v861
    %v935 = vunpack.c.l.b16 %v862
    %v936 = vunpack.c.l.b16 %v863
    %v937 = vunpack.c.l.b16 %v864
    %v938 = vunpack.c.l.b16 %v865
    %v939 = vunpack.c.l.b16 %v866
    %v940 = vunpack.c.l.b16 %v867
    %v941 = vunpack.c.l.b16 %v868
    %v942 = vunpack.c.l.b16 %v869
    %v943 = vunpack.c.l.b16 %v870
    %v944 = vunpack.c.l.b16 %v871
    %v945 = vunpack.c.l.b16 %v872
    %v946 = vunpack.c.l.b16 %v873
    %v947 = vunpack.c.l.b16 %v874
    %v948 = vunpack.c.l.b16 %v875
    %v949 = vunpack.c.l.b16 %v876
    %v950 = vunpack.c.l.b16 %v877
    %v951 = vunpack.c.l.b16 %v878
    %v952 = vunpack.c.l.b16 %v879
    %v953 = vunpack.c.l.b16 %v880
    %v954 = vunpack.c.l.b16 %v881
    %v955 = vunpack.c.l.b16 %v882
    %v956 = vunpack.c.l.b16 %v883
    %v957 = vunpack.c.l.b16 %v884
    %v958 = vunpack.c.l.b16 %v885
    %v959 = vunpack.c.l.b16 %v886
    %v960 = vunpack.c.l.b16 %v887
    %v961 = vunpack.c.l.b16 %v888
    %v962 = vpack.c.b16 %v931, %v930
    %v963 = vpack.c.b16 %v933, %v932
    %v964 = vpack.c.b16 %v935, %v934
    %v965 = vpack.c.b16 %v937, %v936
    %v966 = vpack.c.b16 %v939, %v938
    %v967 = vpack.c.b16 %v941, %v940
    %v968 = vpack.c.b16 %v943, %v942
    %v969 = vpack.c.b16 %v945, %v944
    %v970 = vpack.c.b16 %v947, %v946
    %v971 = vpack.c.b16 %v949, %v948
    %v972 = vpack.c.b16 %v951, %v950
    %v973 = vpack.c.b16 %v953, %v952
    %v974 = vpack.c.b16 %v955, %v954
    %v975 = vpack.c.b16 %v957, %v956
    %v976 = vpack.c.b16 %v959, %v958
    %v977 = vpack.c.b16 %v961, %v960
    %994 = vmatprep.subr.bf16.mxu0 0
    %995 = vmatpush1.bf16.msra.mxu0 %v962
    %996 = vmatprep.subr.bf16.mxu0 0
    %997 = vmatpush1.bf16.msra.mxu0 %v963
    %998 = vmatprep.subr.bf16.mxu0 0
    %999 = vmatpush1.bf16.msra.mxu0 %v964
    %1000 = vmatprep.subr.bf16.mxu0 0
    %1001 = vmatpush1.bf16.msra.mxu0 %v965
    %1002 = vmatprep.subr.bf16.mxu0 0
    %1003 = vmatpush1.bf16.msra.mxu0 %v966
    %1004 = vmatprep.subr.bf16.mxu0 0
    %1005 = vmatpush1.bf16.msra.mxu0 %v967
    %1006 = vmatprep.subr.bf16.mxu0 0
    %1007 = vmatpush1.bf16.msra.mxu0 %v968
    %1008 = vmatprep.subr.bf16.mxu0 0
    %1009 = vmatpush1.bf16.msra.mxu0 %v969
    %1010 = vmatprep.subr.bf16.mxu0 0
    %1011 = vmatpush1.bf16.msra.mxu0 %v970
    %1012 = vmatprep.subr.bf16.mxu0 0
    %1013 = vmatpush1.bf16.msra.mxu0 %v971
    %1014 = vmatprep.subr.bf16.mxu0 0
    %1015 = vmatpush1.bf16.msra.mxu0 %v972
    %1016 = vmatprep.subr.bf16.mxu0 0
    %1017 = vmatpush1.bf16.msra.mxu0 %v973
    %1018 = vmatprep.subr.bf16.mxu0 0
    %1019 = vmatpush1.bf16.msra.mxu0 %v974
    %1020 = vmatprep.subr.bf16.mxu0 0
    %1021 = vmatpush1.bf16.msra.mxu0 %v975
    %1022 = vmatprep.subr.bf16.mxu0 0
    %1023 = vmatpush1.bf16.msra.mxu0 %v976
    %1024 = vmatprep.subr.bf16.mxu0 0
    %1025 = vmatpush1.bf16.msra.mxu0 %v977
    %1026 = vmatprep.mubr.bf16.mxu0 %v891
    %1027 = vmatmul.mubr.bf16.gmra.mrb[0].mxu0 %v890
    %v1028 = vpop.f32.mrb[0].mxu0
    %v1029 = vadd.f32 %v896, %v1028
    %v1030 = vpop.f32.mrb[0].mxu0
    %v1031 = vpop.f32.mrb[0].mxu0
    %v1032 = vpop.f32.mrb[0].mxu0
    %1033 = vdwg.mxu0
    %v1034 = vmax.f32 %v1029, 0.0
    %v1035 = vld [vmem:[%s7] sm:$0xff]
    %v1036 = vld [vmem:[%s7 + $0x8] sm:$0xff]
    %v1037 = vld [vmem:[%s7 + $0x10] sm:$0xff]
    %v1038 = vld [vmem:[%s7 + $0x18] sm:$0xff]
    %v1039 = vld [vmem:[%s7 + $0x20] sm:$0xff]
    %v1040 = vld [vmem:[%s7 + $0x28] sm:$0xff]
    %v1041 = vld [vmem:[%s7 + $0x30] sm:$0xff]
    %v1042 = vld [vmem:[%s7 + $0x38] sm:$0xff]
    %v1043 = vld [vmem:[%s7 + $0x40] sm:$0xff]
    %v1044 = vld [vmem:[%s7 + $0x48] sm:$0xff]
    %v1045 = vld [vmem:[%s7 + $0x50] sm:$0xff]
    %v1046 = vld [vmem:[%s7 + $0x58] sm:$0xff]
    %v1047 = vld [vmem:[%s7 + $0x60] sm:$0xff]
    %v1048 = vld [vmem:[%s7 + $0x68] sm:$0xff]
    %v1049 = vld [vmem:[%s7 + $0x70] sm:$0xff]
    %v1050 = vld [vmem:[%s7 + $0x78] sm:$0xff]
    %v1051 = vld [vmem:[%s8] sm:$0x3]
    %v1052 = vpack.c.bf16 %v1034, %v1034
    %v1054 = vlaneseq
    %v1055 = vshrl.u32 %v1054, 7
    %v1056 = vsub.s32 0, %v1055
    %v1057 = vrot.slane %v1051, %v1056
    %v1058 = vlaneseq
    %v1059 = vshrl.u32 %v1058, 7
    %v1060 = vsub.s32 1, %v1059
    %v1061 = vrot.slane %v1051, %v1060
    %v1080 = vunpack.c.l.b16 %v1035
    %v1081 = vunpack.c.h.b16 %v1035
    %v1082 = vunpack.c.l.b16 %v1036
    %v1083 = vunpack.c.h.b16 %v1036
    %v1084 = vunpack.c.l.b16 %v1037
    %v1085 = vunpack.c.h.b16 %v1037
    %v1086 = vunpack.c.l.b16 %v1038
    %v1087 = vunpack.c.h.b16 %v1038
    %v1088 = vunpack.c.l.b16 %v1039
    %v1089 = vunpack.c.h.b16 %v1039
    %v1090 = vunpack.c.l.b16 %v1040
    %v1091 = vunpack.c.h.b16 %v1040
    %v1092 = vunpack.c.l.b16 %v1041
    %v1093 = vunpack.c.h.b16 %v1041
    %v1094 = vunpack.c.l.b16 %v1042
    %v1095 = vunpack.c.h.b16 %v1042
    %v1096 = vunpack.c.l.b16 %v1043
    %v1097 = vunpack.c.h.b16 %v1043
    %v1098 = vunpack.c.l.b16 %v1044
    %v1099 = vunpack.c.h.b16 %v1044
    %v1100 = vunpack.c.l.b16 %v1045
    %v1101 = vunpack.c.h.b16 %v1045
    %v1102 = vunpack.c.l.b16 %v1046
    %v1103 = vunpack.c.h.b16 %v1046
    %v1104 = vunpack.c.l.b16 %v1047
    %v1105 = vunpack.c.h.b16 %v1047
    %v1106 = vunpack.c.l.b16 %v1048
    %v1107 = vunpack.c.h.b16 %v1048
    %v1108 = vunpack.c.l.b16 %v1049
    %v1109 = vunpack.c.h.b16 %v1049
    %v1110 = vunpack.c.l.b16 %v1050
    %v1111 = vunpack.c.h.b16 %v1050
    %v1112 = vpack.c.b16 %v1082, %v1080
    %v1113 = vpack.c.b16 %v1083, %v1081
    %v1114 = vpack.c.b16 %v1086, %v1084
    %v1115 = vpack.c.b16 %v1087, %v1085
    %v1116 = vpack.c.b16 %v1090, %v1088
    %v1117 = vpack.c.b16 %v1091, %v1089
    %v1118 = vpack.c.b16 %v1094, %v1092
    %v1119 = vpack.c.b16 %v1095, %v1093
    %v1120 = vpack.c.b16 %v1098, %v1096
    %v1121 = vpack.c.b16 %v1099, %v1097
    %v1122 = vpack.c.b16 %v1102, %v1100
    %v1123 = vpack.c.b16 %v1103, %v1101
    %v1124 = vpack.c.b16 %v1106, %v1104
    %v1125 = vpack.c.b16 %v1107, %v1105
    %v1126 = vpack.c.b16 %v1110, %v1108
    %v1127 = vpack.c.b16 %v1111, %v1109
    %1144 = vmatprep.subr.bf16.mxu0 %v1113
    %1145 = vmatpush1.bf16.msra.mxu0 %v1112
    %1146 = vmatprep.subr.bf16.mxu0 %v1115
    %1147 = vmatpush1.bf16.msra.mxu0 %v1114
    %1148 = vmatprep.subr.bf16.mxu0 %v1117
    %1149 = vmatpush1.bf16.msra.mxu0 %v1116
    %1150 = vmatprep.subr.bf16.mxu0 %v1119
    %1151 = vmatpush1.bf16.msra.mxu0 %v1118
    %1152 = vmatprep.subr.bf16.mxu0 %v1121
    %1153 = vmatpush1.bf16.msra.mxu0 %v1120
    %1154 = vmatprep.subr.bf16.mxu0 %v1123
    %1155 = vmatpush1.bf16.msra.mxu0 %v1122
    %1156 = vmatprep.subr.bf16.mxu0 %v1125
    %1157 = vmatpush1.bf16.msra.mxu0 %v1124
    %1158 = vmatprep.subr.bf16.mxu0 %v1127
    %1159 = vmatpush1.bf16.msra.mxu0 %v1126
    %1160 = vmatprep.subr.bf16.mxu0 0
    %1161 = vmatpush1.bf16.msra.mxu0 0
    %1162 = vmatprep.subr.bf16.mxu0 0
    %1163 = vmatpush1.bf16.msra.mxu0 0
    %1164 = vmatprep.subr.bf16.mxu0 0
    %1165 = vmatpush1.bf16.msra.mxu0 0
    %1166 = vmatprep.subr.bf16.mxu0 0
    %1167 = vmatpush1.bf16.msra.mxu0 0
    %1168 = vmatprep.subr.bf16.mxu0 0
    %1169 = vmatpush1.bf16.msra.mxu0 0
    %1170 = vmatprep.subr.bf16.mxu0 0
    %1171 = vmatpush1.bf16.msra.mxu0 0
    %1172 = vmatprep.subr.bf16.mxu0 0
    %1173 = vmatpush1.bf16.msra.mxu0 0
    %1174 = vmatprep.subr.bf16.mxu0 0
    %1175 = vmatpush1.bf16.msra.mxu0 0
    %1176 = vmatprep.mubr.bf16.mxu0 0
    %1177 = vmatmul.mubr.bf16.gmra.mrb[0].mxu0 %v1052
    %v1178 = vpop.f32.mrb[0].mxu0
    %v1179 = vadd.f32 %v1057, %v1178
    %v1180 = vpop.f32.mrb[0].mxu0
    %v1181 = vadd.f32 %v1061, %v1180
    %v1182 = vpop.f32.mrb[0].mxu0
    %v1183 = vpop.f32.mrb[0].mxu0
    %1184 = vdwg.mxu0
    %v1185 = vmax.f32 %v1179, 0.0
    %v1186 = vmax.f32 %v1181, 0.0
    %v1187 = vld [vmem:[%s9] sm:$0xff]
    %v1188 = vld [vmem:[%s9 + $0x8] sm:$0xff]
    %v1189 = vld [vmem:[%s9 + $0x10] sm:$0xff]
    %v1190 = vld [vmem:[%s9 + $0x18] sm:$0xff]
    %v1191 = vld [vmem:[%s9 + $0x20] sm:$0xff]
    %v1192 = vld [vmem:[%s9 + $0x28] sm:$0xff]
    %v1193 = vld [vmem:[%s9 + $0x30] sm:$0xff]
    %v1194 = vld [vmem:[%s9 + $0x38] sm:$0xff]
    %v1195 = vld [vmem:[%s9 + $0x40] sm:$0xff]
    %v1196 = vld [vmem:[%s9 + $0x48] sm:$0xff]
    %v1197 = vld [vmem:[%s9 + $0x50] sm:$0xff]
    %v1198 = vld [vmem:[%s9 + $0x58] sm:$0xff]
    %v1199 = vld [vmem:[%s9 + $0x60] sm:$0xff]
    %v1200 = vld [vmem:[%s9 + $0x68] sm:$0xff]
    %v1201 = vld [vmem:[%s9 + $0x70] sm:$0xff]
    %v1202 = vld [vmem:[%s9 + $0x78] sm:$0xff]
    %v1203 = vld [vmem:[%s9 + $0x80] sm:$0xff]
    %v1204 = vld [vmem:[%s9 + $0x88] sm:$0xff]
    %v1205 = vld [vmem:[%s9 + $0x90] sm:$0xff]
    %v1206 = vld [vmem:[%s9 + $0x98] sm:$0xff]
    %v1207 = vld [vmem:[%s9 + $0xa0] sm:$0xff]
    %v1208 = vld [vmem:[%s9 + $0xa8] sm:$0xff]
    %v1209 = vld [vmem:[%s9 + $0xb0] sm:$0xff]
    %v1210 = vld [vmem:[%s9 + $0xb8] sm:$0xff]
    %v1211 = vld [vmem:[%s9 + $0xc0] sm:$0xff]
    %v1212 = vld [vmem:[%s9 + $0xc8] sm:$0xff]
    %v1213 = vld [vmem:[%s9 + $0xd0] sm:$0xff]
    %v1214 = vld [vmem:[%s9 + $0xd8] sm:$0xff]
    %v1215 = vld [vmem:[%s9 + $0xe0] sm:$0xff]
    %v1216 = vld [vmem:[%s9 + $0xe8] sm:$0xff]
    %v1217 = vld [vmem:[%s9 + $0xf0] sm:$0xff]
    %v1218 = vld [vmem:[%s9 + $0xf8] sm:$0xff]
    %v1219 = vld [vmem:[%s9 + $0x100] sm:$0xff]
    %v1220 = vld [vmem:[%s9 + $0x108] sm:$0xff]
    %v1221 = vld [vmem:[%s9 + $0x110] sm:$0xff]
    %v1222 = vld [vmem:[%s9 + $0x118] sm:$0xff]
    %v1223 = vld [vmem:[%s9 + $0x120] sm:$0xff]
    %v1224 = vld [vmem:[%s9 + $0x128] sm:$0xff]
    %v1225 = vld [vmem:[%s9 + $0x130] sm:$0xff]
    %v1226 = vld [vmem:[%s9 + $0x138] sm:$0xff]
    %v1227 = vld [vmem:[%s9 + $0x140] sm:$0xff]
    %v1228 = vld [vmem:[%s9 + $0x148] sm:$0xff]
    %v1229 = vld [vmem:[%s9 + $0x150] sm:$0xff]
    %v1230 = vld [vmem:[%s9 + $0x158] sm:$0xff]
    %v1231 = vld [vmem:[%s9 + $0x160] sm:$0xff]
    %v1232 = vld [vmem:[%s9 + $0x168] sm:$0xff]
    %v1233 = vld [vmem:[%s9 + $0x170] sm:$0xff]
    %v1234 = vld [vmem:[%s9 + $0x178] sm:$0xff]
    %v1235 = vld [vmem:[%s9 + $0x180] sm:$0xff]
    %v1236 = vld [vmem:[%s9 + $0x188] sm:$0xff]
    %v1237 = vld [vmem:[%s9 + $0x190] sm:$0xff]
    %v1238 = vld [vmem:[%s9 + $0x198] sm:$0xff]
    %v1239 = vld [vmem:[%s9 + $0x1a0] sm:$0xff]
    %v1240 = vld [vmem:[%s9 + $0x1a8] sm:$0xff]
    %v1241 = vld [vmem:[%s9 + $0x1b0] sm:$0xff]
    %v1242 = vld [vmem:[%s9 + $0x1b8] sm:$0xff]
    %v1243 = vld [vmem:[%s9 + $0x1c0] sm:$0xff]
    %v1244 = vld [vmem:[%s9 + $0x1c8] sm:$0xff]
    %v1245 = vld [vmem:[%s9 + $0x1d0] sm:$0xff]
    %v1246 = vld [vmem:[%s9 + $0x1d8] sm:$0xff]
    %v1247 = vld [vmem:[%s9 + $0x1e0] sm:$0xff]
    %v1248 = vld [vmem:[%s9 + $0x1e8] sm:$0xff]
    %v1249 = vld [vmem:[%s9 + $0x1f0] sm:$0xff]
    %v1250 = vld [vmem:[%s9 + $0x1f8] sm:$0xff]
    %v1251 = vld [vmem:[%s10] sm:$0xf]
    %v1252 = vpack.c.bf16 %v1185, %v1185
    %v1253 = vpack.c.bf16 %v1186, %v1186
    %v1255 = vlaneseq
    %v1256 = vshrl.u32 %v1255, 7
    %v1257 = vsub.s32 0, %v1256
    %v1258 = vrot.slane %v1251, %v1257
    %v1259 = vlaneseq
    %v1260 = vshrl.u32 %v1259, 7
    %v1261 = vsub.s32 1, %v1260
    %v1262 = vrot.slane %v1251, %v1261
    %v1263 = vlaneseq
    %v1264 = vshrl.u32 %v1263, 7
    %v1265 = vsub.s32 2, %v1264
    %v1266 = vrot.slane %v1251, %v1265
    %v1267 = vlaneseq
    %v1268 = vshrl.u32 %v1267, 7
    %v1269 = vsub.s32 3, %v1268
    %v1270 = vrot.slane %v1251, %v1269
    %v1339 = vunpack.c.l.b16 %v1187
    %v1340 = vunpack.c.h.b16 %v1187
    %v1341 = vunpack.c.l.b16 %v1188
    %v1342 = vunpack.c.h.b16 %v1188
    %v1343 = vunpack.c.l.b16 %v1189
    %v1344 = vunpack.c.h.b16 %v1189
    %v1345 = vunpack.c.l.b16 %v1190
    %v1346 = vunpack.c.h.b16 %v1190
    %v1347 = vunpack.c.l.b16 %v1191
    %v1348 = vunpack.c.h.b16 %v1191
    %v1349 = vunpack.c.l.b16 %v1192
    %v1350 = vunpack.c.h.b16 %v1192
    %v1351 = vunpack.c.l.b16 %v1193
    %v1352 = vunpack.c.h.b16 %v1193
    %v1353 = vunpack.c.l.b16 %v1194
    %v1354 = vunpack.c.h.b16 %v1194
    %v1355 = vunpack.c.l.b16 %v1195
    %v1356 = vunpack.c.h.b16 %v1195
    %v1357 = vunpack.c.l.b16 %v1196
    %v1358 = vunpack.c.h.b16 %v1196
    %v1359 = vunpack.c.l.b16 %v1197
    %v1360 = vunpack.c.h.b16 %v1197
    %v1361 = vunpack.c.l.b16 %v1198
    %v1362 = vunpack.c.h.b16 %v1198
    %v1363 = vunpack.c.l.b16 %v1199
    %v1364 = vunpack.c.h.b16 %v1199
    %v1365 = vunpack.c.l.b16 %v1200
    %v1366 = vunpack.c.h.b16 %v1200
    %v1367 = vunpack.c.l.b16 %v1201
    %v1368 = vunpack.c.h.b16 %v1201
    %v1369 = vunpack.c.l.b16 %v1202
    %v1370 = vunpack.c.h.b16 %v1202
    %v1371 = vunpack.c.l.b16 %v1203
    %v1372 = vunpack.c.h.b16 %v1203
    %v1373 = vunpack.c.l.b16 %v1204
    %v1374 = vunpack.c.h.b16 %v1204
    %v1375 = vunpack.c.l.b16 %v1205
    %v1376 = vunpack.c.h.b16 %v1205
    %v1377 = vunpack.c.l.b16 %v1206
    %v1378 = vunpack.c.h.b16 %v1206
    %v1379 = vunpack.c.l.b16 %v1207
    %v1380 = vunpack.c.h.b16 %v1207
    %v1381 = vunpack.c.l.b16 %v1208
    %v1382 = vunpack.c.h.b16 %v1208
    %v1383 = vunpack.c.l.b16 %v1209
    %v1384 = vunpack.c.h.b16 %v1209
    %v1385 = vunpack.c.l.b16 %v1210
    %v1386 = vunpack.c.h.b16 %v1210
    %v1387 = vunpack.c.l.b16 %v1211
    %v1388 = vunpack.c.h.b16 %v1211
    %v1389 = vunpack.c.l.b16 %v1212
    %v1390 = vunpack.c.h.b16 %v1212
    %v1391 = vunpack.c.l.b16 %v1213
    %v1392 = vunpack.c.h.b16 %v1213
    %v1393 = vunpack.c.l.b16 %v1214
    %v1394 = vunpack.c.h.b16 %v1214
    %v1395 = vunpack.c.l.b16 %v1215
    %v1396 = vunpack.c.h.b16 %v1215
    %v1397 = vunpack.c.l.b16 %v1216
    %v1398 = vunpack.c.h.b16 %v1216
    %v1399 = vunpack.c.l.b16 %v1217
    %v1400 = vunpack.c.h.b16 %v1217
    %v1401 = vunpack.c.l.b16 %v1218
    %v1402 = vunpack.c.h.b16 %v1218
    %v1403 = vunpack.c.l.b16 %v1219
    %v1404 = vunpack.c.h.b16 %v1219
    %v1405 = vunpack.c.l.b16 %v1220
    %v1406 = vunpack.c.h.b16 %v1220
    %v1407 = vunpack.c.l.b16 %v1221
    %v1408 = vunpack.c.h.b16 %v1221
    %v1409 = vunpack.c.l.b16 %v1222
    %v1410 = vunpack.c.h.b16 %v1222
    %v1411 = vunpack.c.l.b16 %v1223
    %v1412 = vunpack.c.h.b16 %v1223
    %v1413 = vunpack.c.l.b16 %v1224
    %v1414 = vunpack.c.h.b16 %v1224
    %v1415 = vunpack.c.l.b16 %v1225
    %v1416 = vunpack.c.h.b16 %v1225
    %v1417 = vunpack.c.l.b16 %v1226
    %v1418 = vunpack.c.h.b16 %v1226
    %v1419 = vunpack.c.l.b16 %v1227
    %v1420 = vunpack.c.h.b16 %v1227
    %v1421 = vunpack.c.l.b16 %v1228
    %v1422 = vunpack.c.h.b16 %v1228
    %v1423 = vunpack.c.l.b16 %v1229
    %v1424 = vunpack.c.h.b16 %v1229
    %v1425 = vunpack.c.l.b16 %v1230
    %v1426 = vunpack.c.h.b16 %v1230
    %v1427 = vunpack.c.l.b16 %v1231
    %v1428 = vunpack.c.h.b16 %v1231
    %v1429 = vunpack.c.l.b16 %v1232
    %v1430 = vunpack.c.h.b16 %v1232
    %v1431 = vunpack.c.l.b16 %v1233
    %v1432 = vunpack.c.h.b16 %v1233
    %v1433 = vunpack.c.l.b16 %v1234
    %v1434 = vunpack.c.h.b16 %v1234
    %v1435 = vunpack.c.l.b16 %v1235
    %v1436 = vunpack.c.h.b16 %v1235
    %v1437 = vunpack.c.l.b16 %v1236
    %v1438 = vunpack.c.h.b16 %v1236
    %v1439 = vunpack.c.l.b16 %v1237
    %v1440 = vunpack.c.h.b16 %v1237
    %v1441 = vunpack.c.l.b16 %v1238
    %v1442 = vunpack.c.h.b16 %v1238
    %v1443 = vunpack.c.l.b16 %v1239
    %v1444 = vunpack.c.h.b16 %v1239
    %v1445 = vunpack.c.l.b16 %v1240
    %v1446 = vunpack.c.h.b16 %v1240
    %v1447 = vunpack.c.l.b16 %v1241
    %v1448 = vunpack.c.h.b16 %v1241
    %v1449 = vunpack.c.l.b16 %v1242
    %v1450 = vunpack.c.h.b16 %v1242
    %v1451 = vunpack.c.l.b16 %v1243
    %v1452 = vunpack.c.h.b16 %v1243
    %v1453 = vunpack.c.l.b16 %v1244
    %v1454 = vunpack.c.h.b16 %v1244
    %v1455 = vunpack.c.l.b16 %v1245
    %v1456 = vunpack.c.h.b16 %v1245
    %v1457 = vunpack.c.l.b16 %v1246
    %v1458 = vunpack.c.h.b16 %v1246
    %v1459 = vunpack.c.l.b16 %v1247
    %v1460 = vunpack.c.h.b16 %v1247
    %v1461 = vunpack.c.l.b16 %v1248
    %v1462 = vunpack.c.h.b16 %v1248
    %v1463 = vunpack.c.l.b16 %v1249
    %v1464 = vunpack.c.h.b16 %v1249
    %v1465 = vunpack.c.l.b16 %v1250
    %v1466 = vunpack.c.h.b16 %v1250
    %v1467 = vpack.c.b16 %v1343, %v1339
    %v1468 = vpack.c.b16 %v1344, %v1340
    %v1469 = vpack.c.b16 %v1345, %v1341
    %v1470 = vpack.c.b16 %v1346, %v1342
    %v1471 = vpack.c.b16 %v1351, %v1347
    %v1472 = vpack.c.b16 %v1352, %v1348
    %v1473 = vpack.c.b16 %v1353, %v1349
    %v1474 = vpack.c.b16 %v1354, %v1350
    %v1475 = vpack.c.b16 %v1359, %v1355
    %v1476 = vpack.c.b16 %v1360, %v1356
    %v1477 = vpack.c.b16 %v1361, %v1357
    %v1478 = vpack.c.b16 %v1362, %v1358
    %v1479 = vpack.c.b16 %v1367, %v1363
    %v1480 = vpack.c.b16 %v1368, %v1364
    %v1481 = vpack.c.b16 %v1369, %v1365
    %v1482 = vpack.c.b16 %v1370, %v1366
    %v1483 = vpack.c.b16 %v1375, %v1371
    %v1484 = vpack.c.b16 %v1376, %v1372
    %v1485 = vpack.c.b16 %v1377, %v1373
    %v1486 = vpack.c.b16 %v1378, %v1374
    %v1487 = vpack.c.b16 %v1383, %v1379
    %v1488 = vpack.c.b16 %v1384, %v1380
    %v1489 = vpack.c.b16 %v1385, %v1381
    %v1490 = vpack.c.b16 %v1386, %v1382
    %v1491 = vpack.c.b16 %v1391, %v1387
    %v1492 = vpack.c.b16 %v1392, %v1388
    %v1493 = vpack.c.b16 %v1393, %v1389
    %v1494 = vpack.c.b16 %v1394, %v1390
    %v1495 = vpack.c.b16 %v1399, %v1395
    %v1496 = vpack.c.b16 %v1400, %v1396
    %v1497 = vpack.c.b16 %v1401, %v1397
    %v1498 = vpack.c.b16 %v1402, %v1398
    %v1499 = vpack.c.b16 %v1407, %v1403
    %v1500 = vpack.c.b16 %v1408, %v1404
    %v1501 = vpack.c.b16 %v1409, %v1405
    %v1502 = vpack.c.b16 %v1410, %v1406
    %v1503 = vpack.c.b16 %v1415, %v1411
    %v1504 = vpack.c.b16 %v1416, %v1412
    %v1505 = vpack.c.b16 %v1417, %v1413
    %v1506 = vpack.c.b16 %v1418, %v1414
    %v1507 = vpack.c.b16 %v1423, %v1419
    %v1508 = vpack.c.b16 %v1424, %v1420
    %v1509 = vpack.c.b16 %v1425, %v1421
    %v1510 = vpack.c.b16 %v1426, %v1422
    %v1511 = vpack.c.b16 %v1431, %v1427
    %v1512 = vpack.c.b16 %v1432, %v1428
    %v1513 = vpack.c.b16 %v1433, %v1429
    %v1514 = vpack.c.b16 %v1434, %v1430
    %v1515 = vpack.c.b16 %v1439, %v1435
    %v1516 = vpack.c.b16 %v1440, %v1436
    %v1517 = vpack.c.b16 %v1441, %v1437
    %v1518 = vpack.c.b16 %v1442, %v1438
    %v1519 = vpack.c.b16 %v1447, %v1443
    %v1520 = vpack.c.b16 %v1448, %v1444
    %v1521 = vpack.c.b16 %v1449, %v1445
    %v1522 = vpack.c.b16 %v1450, %v1446
    %v1523 = vpack.c.b16 %v1455, %v1451
    %v1524 = vpack.c.b16 %v1456, %v1452
    %v1525 = vpack.c.b16 %v1457, %v1453
    %v1526 = vpack.c.b16 %v1458, %v1454
    %v1527 = vpack.c.b16 %v1463, %v1459
    %v1528 = vpack.c.b16 %v1464, %v1460
    %v1529 = vpack.c.b16 %v1465, %v1461
    %v1530 = vpack.c.b16 %v1466, %v1462
    %1595 = vmatprep.subr.bf16.mxu0 %v1468
    %1596 = vmatpush1.bf16.msra.mxu0 %v1467
    %1597 = vmatprep.subr.bf16.mxu0 %v1472
    %1598 = vmatpush1.bf16.msra.mxu0 %v1471
    %1599 = vmatprep.subr.bf16.mxu0 %v1476
    %1600 = vmatpush1.bf16.msra.mxu0 %v1475
    %1601 = vmatprep.subr.bf16.mxu0 %v1480
    %1602 = vmatpush1.bf16.msra.mxu0 %v1479
    %1603 = vmatprep.subr.bf16.mxu0 %v1484
    %1604 = vmatpush1.bf16.msra.mxu0 %v1483
    %1605 = vmatprep.subr.bf16.mxu0 %v1488
    %1606 = vmatpush1.bf16.msra.mxu0 %v1487
    %1607 = vmatprep.subr.bf16.mxu0 %v1492
    %1608 = vmatpush1.bf16.msra.mxu0 %v1491
    %1609 = vmatprep.subr.bf16.mxu0 %v1496
    %1610 = vmatpush1.bf16.msra.mxu0 %v1495
    %1611 = vmatprep.subr.bf16.mxu0 %v1500
    %1612 = vmatpush1.bf16.msra.mxu0 %v1499
    %1613 = vmatprep.subr.bf16.mxu0 %v1504
    %1614 = vmatpush1.bf16.msra.mxu0 %v1503
    %1615 = vmatprep.subr.bf16.mxu0 %v1508
    %1616 = vmatpush1.bf16.msra.mxu0 %v1507
    %1617 = vmatprep.subr.bf16.mxu0 %v1512
    %1618 = vmatpush1.bf16.msra.mxu0 %v1511
    %1619 = vmatprep.subr.bf16.mxu0 %v1516
    %1620 = vmatpush1.bf16.msra.mxu0 %v1515
    %1621 = vmatprep.subr.bf16.mxu0 %v1520
    %1622 = vmatpush1.bf16.msra.mxu0 %v1519
    %1623 = vmatprep.subr.bf16.mxu0 %v1524
    %1624 = vmatpush1.bf16.msra.mxu0 %v1523
    %1625 = vmatprep.subr.bf16.mxu0 %v1528
    %1626 = vmatpush1.bf16.msra.mxu0 %v1527
    %1627 = vmatprep.mubr.bf16.mxu0 %v1253
    %1628 = vmatmul.mubr.bf16.gmra.mrb[0].mxu0 %v1252
    %v1629 = vpop.f32.mrb[0].mxu0
    %v1630 = vadd.f32 %v1258, %v1629
    %v1631 = vpop.f32.mrb[0].mxu0
    %v1632 = vadd.f32 %v1262, %v1631
    %v1633 = vpop.f32.mrb[0].mxu0
    %v1634 = vpop.f32.mrb[0].mxu0
    %1635 = vdwg.mxu0
    %1636 = vmatprep.subr.bf16.mxu0 %v1470
    %1637 = vmatpush1.bf16.msra.mxu0 %v1469
    %1638 = vmatprep.subr.bf16.mxu0 %v1474
    %1639 = vmatpush1.bf16.msra.mxu0 %v1473
    %1640 = vmatprep.subr.bf16.mxu0 %v1478
    %1641 = vmatpush1.bf16.msra.mxu0 %v1477
    %1642 = vmatprep.subr.bf16.mxu0 %v1482
    %1643 = vmatpush1.bf16.msra.mxu0 %v1481
    %1644 = vmatprep.subr.bf16.mxu0 %v1486
    %1645 = vmatpush1.bf16.msra.mxu0 %v1485
    %1646 = vmatprep.subr.bf16.mxu0 %v1490
    %1647 = vmatpush1.bf16.msra.mxu0 %v1489
    %1648 = vmatprep.subr.bf16.mxu0 %v1494
    %1649 = vmatpush1.bf16.msra.mxu0 %v1493
    %1650 = vmatprep.subr.bf16.mxu0 %v1498
    %1651 = vmatpush1.bf16.msra.mxu0 %v1497
    %1652 = vmatprep.subr.bf16.mxu0 %v1502
    %1653 = vmatpush1.bf16.msra.mxu0 %v1501
    %1654 = vmatprep.subr.bf16.mxu0 %v1506
    %1655 = vmatpush1.bf16.msra.mxu0 %v1505
    %1656 = vmatprep.subr.bf16.mxu0 %v1510
    %1657 = vmatpush1.bf16.msra.mxu0 %v1509
    %1658 = vmatprep.subr.bf16.mxu0 %v1514
    %1659 = vmatpush1.bf16.msra.mxu0 %v1513
    %1660 = vmatprep.subr.bf16.mxu0 %v1518
    %1661 = vmatpush1.bf16.msra.mxu0 %v1517
    %1662 = vmatprep.subr.bf16.mxu0 %v1522
    %1663 = vmatpush1.bf16.msra.mxu0 %v1521
    %1664 = vmatprep.subr.bf16.mxu0 %v1526
    %1665 = vmatpush1.bf16.msra.mxu0 %v1525
    %1666 = vmatprep.subr.bf16.mxu0 %v1530
    %1667 = vmatpush1.bf16.msra.mxu0 %v1529
    %1668 = vmatprep.mubr.bf16.mxu0 %v1253
    %1669 = vmatmul.mubr.bf16.gmra.mrb[0].mxu0 %v1252
    %v1670 = vpop.f32.mrb[0].mxu0
    %v1671 = vadd.f32 %v1266, %v1670
    %v1672 = vpop.f32.mrb[0].mxu0
    %v1673 = vadd.f32 %v1270, %v1672
    %v1674 = vpop.f32.mrb[0].mxu0
    %v1675 = vpop.f32.mrb[0].mxu0
    %1676 = vdwg.mxu0
    %v1677 = vmax.f32 %v1630, 0.0
    %v1678 = vmax.f32 %v1632, 0.0
    %v1679 = vmax.f32 %v1671, 0.0
    %v1680 = vmax.f32 %v1673, 0.0
    %v1681 = vld [vmem:[%s11] sm:$0xf]
    %v1682 = vld [vmem:[%s11 + $0x4] sm:$0xf]
    %v1683 = vld [vmem:[%s11 + $0x8] sm:$0xf]
    %v1684 = vld [vmem:[%s11 + $0xc] sm:$0xf]
    %v1685 = vld [vmem:[%s11 + $0x10] sm:$0xf]
    %v1686 = vld [vmem:[%s11 + $0x14] sm:$0xf]
    %v1687 = vld [vmem:[%s11 + $0x18] sm:$0xf]
    %v1688 = vld [vmem:[%s11 + $0x1c] sm:$0xf]
    %v1689 = vld [vmem:[%s11 + $0x20] sm:$0xf]
    %v1690 = vld [vmem:[%s11 + $0x24] sm:$0xf]
    %v1691 = vld [vmem:[%s11 + $0x28] sm:$0xf]
    %v1692 = vld [vmem:[%s11 + $0x2c] sm:$0xf]
    %v1693 = vld [vmem:[%s11 + $0x30] sm:$0xf]
    %v1694 = vld [vmem:[%s11 + $0x34] sm:$0xf]
    %v1695 = vld [vmem:[%s11 + $0x38] sm:$0xf]
    %v1696 = vld [vmem:[%s11 + $0x3c] sm:$0xf]
    %v1697 = vld [vmem:[%s11 + $0x40] sm:$0xf]
    %v1698 = vld [vmem:[%s11 + $0x44] sm:$0xf]
    %v1699 = vld [vmem:[%s11 + $0x48] sm:$0xf]
    %v1700 = vld [vmem:[%s11 + $0x4c] sm:$0xf]
    %v1701 = vld [vmem:[%s11 + $0x50] sm:$0xf]
    %v1702 = vld [vmem:[%s11 + $0x54] sm:$0xf]
    %v1703 = vld [vmem:[%s11 + $0x58] sm:$0xf]
    %v1704 = vld [vmem:[%s11 + $0x5c] sm:$0xf]
    %v1705 = vld [vmem:[%s11 + $0x60] sm:$0xf]
    %v1706 = vld [vmem:[%s11 + $0x64] sm:$0xf]
    %v1707 = vld [vmem:[%s11 + $0x68] sm:$0xf]
    %v1708 = vld [vmem:[%s11 + $0x6c] sm:$0xf]
    %v1709 = vld [vmem:[%s11 + $0x70] sm:$0xf]
    %v1710 = vld [vmem:[%s11 + $0x74] sm:$0xf]
    %v1711 = vld [vmem:[%s11 + $0x78] sm:$0xf]
    %v1712 = vld [vmem:[%s11 + $0x7c] sm:$0xf]
    %v1713 = vld [vmem:[%s11 + $0x80] sm:$0xf]
    %v1714 = vld [vmem:[%s11 + $0x84] sm:$0xf]
    %v1715 = vld [vmem:[%s11 + $0x88] sm:$0xf]
    %v1716 = vld [vmem:[%s11 + $0x8c] sm:$0xf]
    %v1717 = vld [vmem:[%s11 + $0x90] sm:$0xf]
    %v1718 = vld [vmem:[%s11 + $0x94] sm:$0xf]
    %v1719 = vld [vmem:[%s11 + $0x98] sm:$0xf]
    %v1720 = vld [vmem:[%s11 + $0x9c] sm:$0xf]
    %v1721 = vld [vmem:[%s11 + $0xa0] sm:$0xf]
    %v1722 = vld [vmem:[%s11 + $0xa4] sm:$0xf]
    %v1723 = vld [vmem:[%s11 + $0xa8] sm:$0xf]
    %v1724 = vld [vmem:[%s11 + $0xac] sm:$0xf]
    %v1725 = vld [vmem:[%s11 + $0xb0] sm:$0xf]
    %v1726 = vld [vmem:[%s11 + $0xb4] sm:$0xf]
    %v1727 = vld [vmem:[%s11 + $0xb8] sm:$0xf]
    %v1728 = vld [vmem:[%s11 + $0xbc] sm:$0xf]
    %v1729 = vld [vmem:[%s11 + $0xc0] sm:$0xf]
    %v1730 = vld [vmem:[%s11 + $0xc4] sm:$0xf]
    %v1731 = vld [vmem:[%s11 + $0xc8] sm:$0xf]
    %v1732 = vld [vmem:[%s11 + $0xcc] sm:$0xf]
    %v1733 = vld [vmem:[%s11 + $0xd0] sm:$0xf]
    %v1734 = vld [vmem:[%s11 + $0xd4] sm:$0xf]
    %v1735 = vld [vmem:[%s11 + $0xd8] sm:$0xf]
    %v1736 = vld [vmem:[%s11 + $0xdc] sm:$0xf]
    %v1737 = vld [vmem:[%s11 + $0xe0] sm:$0xf]
    %v1738 = vld [vmem:[%s11 + $0xe4] sm:$0xf]
    %v1739 = vld [vmem:[%s11 + $0xe8] sm:$0xf]
    %v1740 = vld [vmem:[%s11 + $0xec] sm:$0xf]
    %v1741 = vld [vmem:[%s11 + $0xf0] sm:$0xf]
    %v1742 = vld [vmem:[%s11 + $0xf4] sm:$0xf]
    %v1743 = vld [vmem:[%s11 + $0xf8] sm:$0xf]
    %v1744 = vld [vmem:[%s11 + $0xfc] sm:$0xf]
    %v1745 = vld [vmem:[%s12] sm:$0x1]
    %v1746 = vpack.c.bf16 %v1677, %v1677
    %v1747 = vpack.c.bf16 %v1678, %v1678
    %v1748 = vpack.c.bf16 %v1679, %v1679
    %v1749 = vpack.c.bf16 %v1680, %v1680
    %v1751 = vlaneseq
    %v1752 = vshrl.u32 %v1751, 7
    %v1753 = vsub.s32 0, %v1752
    %v1754 = vrot.slane %v1745, %v1753
    %v1820 = vunpack.c.l.b16 %v1681
    %v1821 = vunpack.c.l.b16 %v1682
    %v1822 = vunpack.c.l.b16 %v1683
    %v1823 = vunpack.c.l.b16 %v1684
    %v1824 = vunpack.c.l.b16 %v1685
    %v1825 = vunpack.c.l.b16 %v1686
    %v1826 = vunpack.c.l.b16 %v1687
    %v1827 = vunpack.c.l.b16 %v1688
    %v1828 = vunpack.c.l.b16 %v1689
    %v1829 = vunpack.c.l.b16 %v1690
    %v1830 = vunpack.c.l.b16 %v1691
    %v1831 = vunpack.c.l.b16 %v1692
    %v1832 = vunpack.c.l.b16 %v1693
    %v1833 = vunpack.c.l.b16 %v1694
    %v1834 = vunpack.c.l.b16 %v1695
    %v1835 = vunpack.c.l.b16 %v1696
    %v1836 = vunpack.c.l.b16 %v1697
    %v1837 = vunpack.c.l.b16 %v1698
    %v1838 = vunpack.c.l.b16 %v1699
    %v1839 = vunpack.c.l.b16 %v1700
    %v1840 = vunpack.c.l.b16 %v1701
    %v1841 = vunpack.c.l.b16 %v1702
    %v1842 = vunpack.c.l.b16 %v1703
    %v1843 = vunpack.c.l.b16 %v1704
    %v1844 = vunpack.c.l.b16 %v1705
    %v1845 = vunpack.c.l.b16 %v1706
    %v1846 = vunpack.c.l.b16 %v1707
    %v1847 = vunpack.c.l.b16 %v1708
    %v1848 = vunpack.c.l.b16 %v1709
    %v1849 = vunpack.c.l.b16 %v1710
    %v1850 = vunpack.c.l.b16 %v1711
    %v1851 = vunpack.c.l.b16 %v1712
    %v1852 = vunpack.c.l.b16 %v1713
    %v1853 = vunpack.c.l.b16 %v1714
    %v1854 = vunpack.c.l.b16 %v1715
    %v1855 = vunpack.c.l.b16 %v1716
    %v1856 = vunpack.c.l.b16 %v1717
    %v1857 = vunpack.c.l.b16 %v1718
    %v1858 = vunpack.c.l.b16 %v1719
    %v1859 = vunpack.c.l.b16 %v1720
    %v1860 = vunpack.c.l.b16 %v1721
    %v1861 = vunpack.c.l.b16 %v1722
    %v1862 = vunpack.c.l.b16 %v1723
    %v1863 = vunpack.c.l.b16 %v1724
    %v1864 = vunpack.c.l.b16 %v1725
    %v1865 = vunpack.c.l.b16 %v1726
    %v1866 = vunpack.c.l.b16 %v1727
    %v1867 = vunpack.c.l.b16 %v1728
    %v1868 = vunpack.c.l.b16 %v1729
    %v1869 = vunpack.c.l.b16 %v1730
    %v1870 = vunpack.c.l.b16 %v1731
    %v1871 = vunpack.c.l.b16 %v1732
    %v1872 = vunpack.c.l.b16 %v1733
    %v1873 = vunpack.c.l.b16 %v1734
    %v1874 = vunpack.c.l.b16 %v1735
    %v1875 = vunpack.c.l.b16 %v1736
    %v1876 = vunpack.c.l.b16 %v1737
    %v1877 = vunpack.c.l.b16 %v1738
    %v1878 = vunpack.c.l.b16 %v1739
    %v1879 = vunpack.c.l.b16 %v1740
    %v1880 = vunpack.c.l.b16 %v1741
    %v1881 = vunpack.c.l.b16 %v1742
    %v1882 = vunpack.c.l.b16 %v1743
    %v1883 = vunpack.c.l.b16 %v1744
    %v1884 = vpack.c.b16 %v1821, %v1820
    %v1885 = vpack.c.b16 %v1823, %v1822
    %v1886 = vpack.c.b16 %v1825, %v1824
    %v1887 = vpack.c.b16 %v1827, %v1826
    %v1888 = vpack.c.b16 %v1829, %v1828
    %v1889 = vpack.c.b16 %v1831, %v1830
    %v1890 = vpack.c.b16 %v1833, %v1832
    %v1891 = vpack.c.b16 %v1835, %v1834
    %v1892 = vpack.c.b16 %v1837, %v1836
    %v1893 = vpack.c.b16 %v1839, %v1838
    %v1894 = vpack.c.b16 %v1841, %v1840
    %v1895 = vpack.c.b16 %v1843, %v1842
    %v1896 = vpack.c.b16 %v1845, %v1844
    %v1897 = vpack.c.b16 %v1847, %v1846
    %v1898 = vpack.c.b16 %v1849, %v1848
    %v1899 = vpack.c.b16 %v1851, %v1850
    %v1900 = vpack.c.b16 %v1853, %v1852
    %v1901 = vpack.c.b16 %v1855, %v1854
    %v1902 = vpack.c.b16 %v1857, %v1856
    %v1903 = vpack.c.b16 %v1859, %v1858
    %v1904 = vpack.c.b16 %v1861, %v1860
    %v1905 = vpack.c.b16 %v1863, %v1862
    %v1906 = vpack.c.b16 %v1865, %v1864
    %v1907 = vpack.c.b16 %v1867, %v1866
    %v1908 = vpack.c.b16 %v1869, %v1868
    %v1909 = vpack.c.b16 %v1871, %v1870
    %v1910 = vpack.c.b16 %v1873, %v1872
    %v1911 = vpack.c.b16 %v1875, %v1874
    %v1912 = vpack.c.b16 %v1877, %v1876
    %v1913 = vpack.c.b16 %v1879, %v1878
    %v1914 = vpack.c.b16 %v1881, %v1880
    %v1915 = vpack.c.b16 %v1883, %v1882
    %1948 = vmatprep.subr.bf16.mxu0 0
    %1949 = vmatpush1.bf16.msra.mxu0 %v1884
    %1950 = vmatprep.subr.bf16.mxu0 0
    %1951 = vmatpush1.bf16.msra.mxu0 %v1885
    %1952 = vmatprep.subr.bf16.mxu0 0
    %1953 = vmatpush1.bf16.msra.mxu0 %v1886
    %1954 = vmatprep.subr.bf16.mxu0 0
    %1955 = vmatpush1.bf16.msra.mxu0 %v1887
    %1956 = vmatprep.subr.bf16.mxu0 0
    %1957 = vmatpush1.bf16.msra.mxu0 %v1888
    %1958 = vmatprep.subr.bf16.mxu0 0
    %1959 = vmatpush1.bf16.msra.mxu0 %v1889
    %1960 = vmatprep.subr.bf16.mxu0 0
    %1961 = vmatpush1.bf16.msra.mxu0 %v1890
    %1962 = vmatprep.subr.bf16.mxu0 0
    %1963 = vmatpush1.bf16.msra.mxu0 %v1891
    %1964 = vmatprep.subr.bf16.mxu0 0
    %1965 = vmatpush1.bf16.msra.mxu0 %v1892
    %1966 = vmatprep.subr.bf16.mxu0 0
    %1967 = vmatpush1.bf16.msra.mxu0 %v1893
    %1968 = vmatprep.subr.bf16.mxu0 0
    %1969 = vmatpush1.bf16.msra.mxu0 %v1894
    %1970 = vmatprep.subr.bf16.mxu0 0
    %1971 = vmatpush1.bf16.msra.mxu0 %v1895
    %1972 = vmatprep.subr.bf16.mxu0 0
    %1973 = vmatpush1.bf16.msra.mxu0 %v1896
    %1974 = vmatprep.subr.bf16.mxu0 0
    %1975 = vmatpush1.bf16.msra.mxu0 %v1897
    %1976 = vmatprep.subr.bf16.mxu0 0
    %1977 = vmatpush1.bf16.msra.mxu0 %v1898
    %1978 = vmatprep.subr.bf16.mxu0 0
    %1979 = vmatpush1.bf16.msra.mxu0 %v1899
    %1980 = vmatprep.mubr.bf16.mxu0 %v1747
    %1981 = vmatmul.mubr.bf16.gmra.mrb[0].mxu0 %v1746
    %v1982 = vpop.f32.mrb[0].mxu0
    %v1983 = vadd.f32 %v1754, %v1982
    %v1984 = vpop.f32.mrb[0].mxu0
    %v1985 = vpop.f32.mrb[0].mxu0
    %v1986 = vpop.f32.mrb[0].mxu0
    %1987 = vdwg.mxu0
    %1988 = vmatprep.subr.bf16.mxu0 0
    %1989 = vmatpush1.bf16.msra.mxu0 %v1900
    %1990 = vmatprep.subr.bf16.mxu0 0
    %1991 = vmatpush1.bf16.msra.mxu0 %v1901
    %1992 = vmatprep.subr.bf16.mxu0 0
    %1993 = vmatpush1.bf16.msra.mxu0 %v1902
    %1994 = vmatprep.subr.bf16.mxu0 0
    %1995 = vmatpush1.bf16.msra.mxu0 %v1903
    %1996 = vmatprep.subr.bf16.mxu0 0
    %1997 = vmatpush1.bf16.msra.mxu0 %v1904
    %1998 = vmatprep.subr.bf16.mxu0 0
    %1999 = vmatpush1.bf16.msra.mxu0 %v1905
    %2000 = vmatprep.subr.bf16.mxu0 0
    %2001 = vmatpush1.bf16.msra.mxu0 %v1906
    %2002 = vmatprep.subr.bf16.mxu0 0
    %2003 = vmatpush1.bf16.msra.mxu0 %v1907
    %2004 = vmatprep.subr.bf16.mxu0 0
    %2005 = vmatpush1.bf16.msra.mxu0 %v1908
    %2006 = vmatprep.subr.bf16.mxu0 0
    %2007 = vmatpush1.bf16.msra.mxu0 %v1909
    %2008 = vmatprep.subr.bf16.mxu0 0
    %2009 = vmatpush1.bf16.msra.mxu0 %v1910
    %2010 = vmatprep.subr.bf16.mxu0 0
    %2011 = vmatpush1.bf16.msra.mxu0 %v1911
    %2012 = vmatprep.subr.bf16.mxu0 0
    %2013 = vmatpush1.bf16.msra.mxu0 %v1912
    %2014 = vmatprep.subr.bf16.mxu0 0
    %2015 = vmatpush1.bf16.msra.mxu0 %v1913
    %2016 = vmatprep.subr.bf16.mxu0 0
    %2017 = vmatpush1.bf16.msra.mxu0 %v1914
    %2018 = vmatprep.subr.bf16.mxu0 0
    %2019 = vmatpush1.bf16.msra.mxu0 %v1915
    %2020 = vmatprep.mubr.bf16.mxu0 %v1749
    %2021 = vmatmul.mubr.bf16.gmra.mrb[0].mxu0 %v1748
    %v2022 = vpop.f32.mrb[0].mxu0
    %v2023 = vadd.f32 %v1983, %v2022
    %v2024 = vpop.f32.mrb[0].mxu0
    %v2025 = vpop.f32.mrb[0].mxu0
    %v2026 = vpop.f32.mrb[0].mxu0
    %2027 = vdwg.mxu0
    %v2028 = vxor.u32 %v2023, 2147483648
    %v2029 = vmul.f32 %v2028, 1.442695
    %v2030 = vpow.pop %v2029
    %v2031 = vadd.f32 %v2030, 1.0
    %v2032 = vrcp.pop %v2031
    %v2033 = vmul.f32 1.0, %v2032
    %2034 = vst [vmem:[#allocation2] sm:$0xff] %v2033
    %v2035 = vld [vmem:[%s13] sm:$0xf]
    %v2036 = vld [vmem:[%s13 + $0x4] sm:$0xf]
    %v2037 = vld [vmem:[%s13 + $0x8] sm:$0xf]
    %v2038 = vld [vmem:[%s13 + $0xc] sm:$0xf]
    %v2039 = vld [vmem:[%s13 + $0x10] sm:$0xf]
    %v2040 = vld [vmem:[%s13 + $0x14] sm:$0xf]
    %v2041 = vld [vmem:[%s13 + $0x18] sm:$0xf]
    %v2042 = vld [vmem:[%s13 + $0x1c] sm:$0xf]
    %v2043 = vld [vmem:[%s13 + $0x20] sm:$0xf]
    %v2044 = vld [vmem:[%s13 + $0x24] sm:$0xf]
    %v2045 = vld [vmem:[%s13 + $0x28] sm:$0xf]
    %v2046 = vld [vmem:[%s13 + $0x2c] sm:$0xf]
    %v2047 = vld [vmem:[%s13 + $0x30] sm:$0xf]
    %v2048 = vld [vmem:[%s13 + $0x34] sm:$0xf]
    %v2049 = vld [vmem:[%s13 + $0x38] sm:$0xf]
    %v2050 = vld [vmem:[%s13 + $0x3c] sm:$0xf]
    %v2051 = vld [vmem:[%s14] sm:$0x1]
    %v2053 = vlaneseq
    %v2054 = vshrl.u32 %v2053, 7
    %v2055 = vsub.s32 0, %v2054
    %v2056 = vrot.slane %v2051, %v2055
    %v2074 = vunpack.c.l.b16 %v2035
    %v2075 = vunpack.c.l.b16 %v2036
    %v2076 = vunpack.c.l.b16 %v2037
    %v2077 = vunpack.c.l.b16 %v2038
    %v2078 = vunpack.c.l.b16 %v2039
    %v2079 = vunpack.c.l.b16 %v2040
    %v2080 = vunpack.c.l.b16 %v2041
    %v2081 = vunpack.c.l.b16 %v2042
    %v2082 = vunpack.c.l.b16 %v2043
    %v2083 = vunpack.c.l.b16 %v2044
    %v2084 = vunpack.c.l.b16 %v2045
    %v2085 = vunpack.c.l.b16 %v2046
    %v2086 = vunpack.c.l.b16 %v2047
    %v2087 = vunpack.c.l.b16 %v2048
    %v2088 = vunpack.c.l.b16 %v2049
    %v2089 = vunpack.c.l.b16 %v2050
    %v2090 = vpack.c.b16 %v2075, %v2074
    %v2091 = vpack.c.b16 %v2077, %v2076
    %v2092 = vpack.c.b16 %v2079, %v2078
    %v2093 = vpack.c.b16 %v2081, %v2080
    %v2094 = vpack.c.b16 %v2083, %v2082
    %v2095 = vpack.c.b16 %v2085, %v2084
    %v2096 = vpack.c.b16 %v2087, %v2086
    %v2097 = vpack.c.b16 %v2089, %v2088
    %2106 = vmatprep.subr.bf16.mxu0 0
    %2107 = vmatpush1.bf16.msra.mxu0 %v2090
    %2108 = vmatprep.subr.bf16.mxu0 0
    %2109 = vmatpush1.bf16.msra.mxu0 %v2091
    %2110 = vmatprep.subr.bf16.mxu0 0
    %2111 = vmatpush1.bf16.msra.mxu0 %v2092
    %2112 = vmatprep.subr.bf16.mxu0 0
    %2113 = vmatpush1.bf16.msra.mxu0 %v2093
    %2114 = vmatprep.subr.bf16.mxu0 0
    %2115 = vmatpush1.bf16.msra.mxu0 %v2094
    %2116 = vmatprep.subr.bf16.mxu0 0
    %2117 = vmatpush1.bf16.msra.mxu0 %v2095
    %2118 = vmatprep.subr.bf16.mxu0 0
    %2119 = vmatpush1.bf16.msra.mxu0 %v2096
    %2120 = vmatprep.subr.bf16.mxu0 0
    %2121 = vmatpush1.bf16.msra.mxu0 %v2097
    %2122 = vmatprep.subr.bf16.mxu0 0
    %2123 = vmatpush1.bf16.msra.mxu0 0
    %2124 = vmatprep.subr.bf16.mxu0 0
    %2125 = vmatpush1.bf16.msra.mxu0 0
    %2126 = vmatprep.subr.bf16.mxu0 0
    %2127 = vmatpush1.bf16.msra.mxu0 0
    %2128 = vmatprep.subr.bf16.mxu0 0
    %2129 = vmatpush1.bf16.msra.mxu0 0
    %2130 = vmatprep.subr.bf16.mxu0 0
    %2131 = vmatpush1.bf16.msra.mxu0 0
    %2132 = vmatprep.subr.bf16.mxu0 0
    %2133 = vmatpush1.bf16.msra.mxu0 0
    %2134 = vmatprep.subr.bf16.mxu0 0
    %2135 = vmatpush1.bf16.msra.mxu0 0
    %2136 = vmatprep.subr.bf16.mxu0 0
    %2137 = vmatpush1.bf16.msra.mxu0 0
    %2138 = vmatprep.mubr.bf16.mxu0 0
    %2139 = vmatmul.mubr.bf16.gmra.mrb[0].mxu0 %v1052
    %v2140 = vpop.f32.mrb[0].mxu0
    %v2141 = vadd.f32 %v2056, %v2140
    %v2142 = vpop.f32.mrb[0].mxu0
    %v2143 = vpop.f32.mrb[0].mxu0
    %v2144 = vpop.f32.mrb[0].mxu0
    %2145 = vdwg.mxu0
    %v2146 = vmax.f32 %v2141, 0.0
    %v2147 = vld [vmem:[%s15] sm:$0xf]
    %v2148 = vld [vmem:[%s15 + $0x4] sm:$0xf]
    %v2149 = vld [vmem:[%s15 + $0x8] sm:$0xf]
    %v2150 = vld [vmem:[%s15 + $0xc] sm:$0xf]
    %v2151 = vld [vmem:[%s15 + $0x10] sm:$0xf]
    %v2152 = vld [vmem:[%s15 + $0x14] sm:$0xf]
    %v2153 = vld [vmem:[%s15 + $0x18] sm:$0xf]
    %v2154 = vld [vmem:[%s15 + $0x1c] sm:$0xf]
    %v2155 = vld [vmem:[%s15 + $0x20] sm:$0xf]
    %v2156 = vld [vmem:[%s15 + $0x24] sm:$0xf]
    %v2157 = vld [vmem:[%s15 + $0x28] sm:$0xf]
    %v2158 = vld [vmem:[%s15 + $0x2c] sm:$0xf]
    %v2159 = vld [vmem:[%s15 + $0x30] sm:$0xf]
    %v2160 = vld [vmem:[%s15 + $0x34] sm:$0xf]
    %v2161 = vld [vmem:[%s15 + $0x38] sm:$0xf]
    %v2162 = vld [vmem:[%s15 + $0x3c] sm:$0xf]
    %v2163 = vld [vmem:[%s16] sm:$0x1]
    %v2164 = vpack.c.bf16 %v2146, %v2146
    %v2166 = vlaneseq
    %v2167 = vshrl.u32 %v2166, 7
    %v2168 = vsub.s32 0, %v2167
    %v2169 = vrot.slane %v2163, %v2168
    %v2187 = vunpack.c.l.b16 %v2147
    %v2188 = vunpack.c.l.b16 %v2148
    %v2189 = vunpack.c.l.b16 %v2149
    %v2190 = vunpack.c.l.b16 %v2150
    %v2191 = vunpack.c.l.b16 %v2151
    %v2192 = vunpack.c.l.b16 %v2152
    %v2193 = vunpack.c.l.b16 %v2153
    %v2194 = vunpack.c.l.b16 %v2154
    %v2195 = vunpack.c.l.b16 %v2155
    %v2196 = vunpack.c.l.b16 %v2156
    %v2197 = vunpack.c.l.b16 %v2157
    %v2198 = vunpack.c.l.b16 %v2158
    %v2199 = vunpack.c.l.b16 %v2159
    %v2200 = vunpack.c.l.b16 %v2160
    %v2201 = vunpack.c.l.b16 %v2161
    %v2202 = vunpack.c.l.b16 %v2162
    %v2203 = vpack.c.b16 %v2188, %v2187
    %v2204 = vpack.c.b16 %v2190, %v2189
    %v2205 = vpack.c.b16 %v2192, %v2191
    %v2206 = vpack.c.b16 %v2194, %v2193
    %v2207 = vpack.c.b16 %v2196, %v2195
    %v2208 = vpack.c.b16 %v2198, %v2197
    %v2209 = vpack.c.b16 %v2200, %v2199
    %v2210 = vpack.c.b16 %v2202, %v2201
    %2219 = vmatprep.subr.bf16.mxu0 0
    %2220 = vmatpush1.bf16.msra.mxu0 %v2203
    %2221 = vmatprep.subr.bf16.mxu0 0
    %2222 = vmatpush1.bf16.msra.mxu0 %v2204
    %2223 = vmatprep.subr.bf16.mxu0 0
    %2224 = vmatpush1.bf16.msra.mxu0 %v2205
    %2225 = vmatprep.subr.bf16.mxu0 0
    %2226 = vmatpush1.bf16.msra.mxu0 %v2206
    %2227 = vmatprep.subr.bf16.mxu0 0
    %2228 = vmatpush1.bf16.msra.mxu0 %v2207
    %2229 = vmatprep.subr.bf16.mxu0 0
    %2230 = vmatpush1.bf16.msra.mxu0 %v2208
    %2231 = vmatprep.subr.bf16.mxu0 0
    %2232 = vmatpush1.bf16.msra.mxu0 %v2209
    %2233 = vmatprep.subr.bf16.mxu0 0
    %2234 = vmatpush1.bf16.msra.mxu0 %v2210
    %2235 = vmatprep.subr.bf16.mxu0 0
    %2236 = vmatpush1.bf16.msra.mxu0 0
    %2237 = vmatprep.subr.bf16.mxu0 0
    %2238 = vmatpush1.bf16.msra.mxu0 0
    %2239 = vmatprep.subr.bf16.mxu0 0
    %2240 = vmatpush1.bf16.msra.mxu0 0
    %2241 = vmatprep.subr.bf16.mxu0 0
    %2242 = vmatpush1.bf16.msra.mxu0 0
    %2243 = vmatprep.subr.bf16.mxu0 0
    %2244 = vmatpush1.bf16.msra.mxu0 0
    %2245 = vmatprep.subr.bf16.mxu0 0
    %2246 = vmatpush1.bf16.msra.mxu0 0
    %2247 = vmatprep.subr.bf16.mxu0 0
    %2248 = vmatpush1.bf16.msra.mxu0 0
    %2249 = vmatprep.subr.bf16.mxu0 0
    %2250 = vmatpush1.bf16.msra.mxu0 0
    %2251 = vmatprep.mubr.bf16.mxu0 0
    %2252 = vmatmul.mubr.bf16.gmra.mrb[0].mxu0 %v2164
    %v2253 = vpop.f32.mrb[0].mxu0
    %v2254 = vadd.f32 %v2169, %v2253
    %v2255 = vpop.f32.mrb[0].mxu0
    %v2256 = vpop.f32.mrb[0].mxu0
    %v2257 = vpop.f32.mrb[0].mxu0
    %2258 = vdwg.mxu0
    %v2259 = vmax.f32 %v2254, 0.0
    %v2260 = vld [vmem:[%s17] sm:$0xf]
    %v2261 = vld [vmem:[%s17 + $0x4] sm:$0xf]
    %v2262 = vld [vmem:[%s17 + $0x8] sm:$0xf]
    %v2263 = vld [vmem:[%s17 + $0xc] sm:$0xf]
    %v2264 = vld [vmem:[%s17 + $0x10] sm:$0xf]
    %v2265 = vld [vmem:[%s17 + $0x14] sm:$0xf]
    %v2266 = vld [vmem:[%s17 + $0x18] sm:$0xf]
    %v2267 = vld [vmem:[%s17 + $0x1c] sm:$0xf]
    %v2268 = vld [vmem:[%s17 + $0x20] sm:$0xf]
    %v2269 = vld [vmem:[%s17 + $0x24] sm:$0xf]
    %v2270 = vld [vmem:[%s17 + $0x28] sm:$0xf]
    %v2271 = vld [vmem:[%s17 + $0x2c] sm:$0xf]
    %v2272 = vld [vmem:[%s17 + $0x30] sm:$0xf]
    %v2273 = vld [vmem:[%s17 + $0x34] sm:$0xf]
    %v2274 = vld [vmem:[%s17 + $0x38] sm:$0xf]
    %v2275 = vld [vmem:[%s17 + $0x3c] sm:$0xf]
    %v2276 = vld [vmem:[%s18] sm:$0x1]
    %v2277 = vpack.c.bf16 %v2259, %v2259
    %v2279 = vlaneseq
    %v2280 = vshrl.u32 %v2279, 7
    %v2281 = vsub.s32 0, %v2280
    %v2282 = vrot.slane %v2276, %v2281
    %v2300 = vunpack.c.l.b16 %v2260
    %v2301 = vunpack.c.l.b16 %v2261
    %v2302 = vunpack.c.l.b16 %v2262
    %v2303 = vunpack.c.l.b16 %v2263
    %v2304 = vunpack.c.l.b16 %v2264
    %v2305 = vunpack.c.l.b16 %v2265
    %v2306 = vunpack.c.l.b16 %v2266
    %v2307 = vunpack.c.l.b16 %v2267
    %v2308 = vunpack.c.l.b16 %v2268
    %v2309 = vunpack.c.l.b16 %v2269
    %v2310 = vunpack.c.l.b16 %v2270
    %v2311 = vunpack.c.l.b16 %v2271
    %v2312 = vunpack.c.l.b16 %v2272
    %v2313 = vunpack.c.l.b16 %v2273
    %v2314 = vunpack.c.l.b16 %v2274
    %v2315 = vunpack.c.l.b16 %v2275
    %v2316 = vpack.c.b16 %v2301, %v2300
    %v2317 = vpack.c.b16 %v2303, %v2302
    %v2318 = vpack.c.b16 %v2305, %v2304
    %v2319 = vpack.c.b16 %v2307, %v2306
    %v2320 = vpack.c.b16 %v2309, %v2308
    %v2321 = vpack.c.b16 %v2311, %v2310
    %v2322 = vpack.c.b16 %v2313, %v2312
    %v2323 = vpack.c.b16 %v2315, %v2314
    %2332 = vmatprep.subr.bf16.mxu0 0
    %2333 = vmatpush1.bf16.msra.mxu0 %v2316
    %2334 = vmatprep.subr.bf16.mxu0 0
    %2335 = vmatpush1.bf16.msra.mxu0 %v2317
    %2336 = vmatprep.subr.bf16.mxu0 0
    %2337 = vmatpush1.bf16.msra.mxu0 %v2318
    %2338 = vmatprep.subr.bf16.mxu0 0
    %2339 = vmatpush1.bf16.msra.mxu0 %v2319
    %2340 = vmatprep.subr.bf16.mxu0 0
    %2341 = vmatpush1.bf16.msra.mxu0 %v2320
    %2342 = vmatprep.subr.bf16.mxu0 0
    %2343 = vmatpush1.bf16.msra.mxu0 %v2321
    %2344 = vmatprep.subr.bf16.mxu0 0
    %2345 = vmatpush1.bf16.msra.mxu0 %v2322
    %2346 = vmatprep.subr.bf16.mxu0 0
    %2347 = vmatpush1.bf16.msra.mxu0 %v2323
    %2348 = vmatprep.subr.bf16.mxu0 0
    %2349 = vmatpush1.bf16.msra.mxu0 0
    %2350 = vmatprep.subr.bf16.mxu0 0
    %2351 = vmatpush1.bf16.msra.mxu0 0
    %2352 = vmatprep.subr.bf16.mxu0 0
    %2353 = vmatpush1.bf16.msra.mxu0 0
    %2354 = vmatprep.subr.bf16.mxu0 0
    %2355 = vmatpush1.bf16.msra.mxu0 0
    %2356 = vmatprep.subr.bf16.mxu0 0
    %2357 = vmatpush1.bf16.msra.mxu0 0
    %2358 = vmatprep.subr.bf16.mxu0 0
    %2359 = vmatpush1.bf16.msra.mxu0 0
    %2360 = vmatprep.subr.bf16.mxu0 0
    %2361 = vmatpush1.bf16.msra.mxu0 0
    %2362 = vmatprep.subr.bf16.mxu0 0
    %2363 = vmatpush1.bf16.msra.mxu0 0
    %2364 = vmatprep.mubr.bf16.mxu0 0
    %2365 = vmatmul.mubr.bf16.gmra.mrb[0].mxu0 %v2277
    %v2366 = vpop.f32.mrb[0].mxu0
    %v2367 = vadd.f32 %v2282, %v2366
    %v2368 = vpop.f32.mrb[0].mxu0
    %v2369 = vpop.f32.mrb[0].mxu0
    %v2370 = vpop.f32.mrb[0].mxu0
    %2371 = vdwg.mxu0
    %v2372 = vmax.f32 %v2367, 0.0
    %v2373 = vld [vmem:[%s19] sm:$0xf]
    %v2374 = vld [vmem:[%s19 + $0x4] sm:$0xf]
    %v2375 = vld [vmem:[%s19 + $0x8] sm:$0xf]
    %v2376 = vld [vmem:[%s19 + $0xc] sm:$0xf]
    %v2377 = vld [vmem:[%s19 + $0x10] sm:$0xf]
    %v2378 = vld [vmem:[%s19 + $0x14] sm:$0xf]
    %v2379 = vld [vmem:[%s19 + $0x18] sm:$0xf]
    %v2380 = vld [vmem:[%s19 + $0x1c] sm:$0xf]
    %v2381 = vld [vmem:[%s19 + $0x20] sm:$0xf]
    %v2382 = vld [vmem:[%s19 + $0x24] sm:$0xf]
    %v2383 = vld [vmem:[%s19 + $0x28] sm:$0xf]
    %v2384 = vld [vmem:[%s19 + $0x2c] sm:$0xf]
    %v2385 = vld [vmem:[%s19 + $0x30] sm:$0xf]
    %v2386 = vld [vmem:[%s19 + $0x34] sm:$0xf]
    %v2387 = vld [vmem:[%s19 + $0x38] sm:$0xf]
    %v2388 = vld [vmem:[%s19 + $0x3c] sm:$0xf]
    %v2389 = vld [vmem:[%s20] sm:$0x1]
    %v2390 = vpack.c.bf16 %v2372, %v2372
    %v2392 = vlaneseq
    %v2393 = vshrl.u32 %v2392, 7
    %v2394 = vsub.s32 0, %v2393
    %v2395 = vrot.slane %v2389, %v2394
    %v2413 = vunpack.c.l.b16 %v2373
    %v2414 = vunpack.c.l.b16 %v2374
    %v2415 = vunpack.c.l.b16 %v2375
    %v2416 = vunpack.c.l.b16 %v2376
    %v2417 = vunpack.c.l.b16 %v2377
    %v2418 = vunpack.c.l.b16 %v2378
    %v2419 = vunpack.c.l.b16 %v2379
    %v2420 = vunpack.c.l.b16 %v2380
    %v2421 = vunpack.c.l.b16 %v2381
    %v2422 = vunpack.c.l.b16 %v2382
    %v2423 = vunpack.c.l.b16 %v2383
    %v2424 = vunpack.c.l.b16 %v2384
    %v2425 = vunpack.c.l.b16 %v2385
    %v2426 = vunpack.c.l.b16 %v2386
    %v2427 = vunpack.c.l.b16 %v2387
    %v2428 = vunpack.c.l.b16 %v2388
    %v2429 = vpack.c.b16 %v2414, %v2413
    %v2430 = vpack.c.b16 %v2416, %v2415
    %v2431 = vpack.c.b16 %v2418, %v2417
    %v2432 = vpack.c.b16 %v2420, %v2419
    %v2433 = vpack.c.b16 %v2422, %v2421
    %v2434 = vpack.c.b16 %v2424, %v2423
    %v2435 = vpack.c.b16 %v2426, %v2425
    %v2436 = vpack.c.b16 %v2428, %v2427
    %2445 = vmatprep.subr.bf16.mxu0 0
    %2446 = vmatpush1.bf16.msra.mxu0 %v2429
    %2447 = vmatprep.subr.bf16.mxu0 0
    %2448 = vmatpush1.bf16.msra.mxu0 %v2430
    %2449 = vmatprep.subr.bf16.mxu0 0
    %2450 = vmatpush1.bf16.msra.mxu0 %v2431
    %2451 = vmatprep.subr.bf16.mxu0 0
    %2452 = vmatpush1.bf16.msra.mxu0 %v2432
    %2453 = vmatprep.subr.bf16.mxu0 0
    %2454 = vmatpush1.bf16.msra.mxu0 %v2433
    %2455 = vmatprep.subr.bf16.mxu0 0
    %2456 = vmatpush1.bf16.msra.mxu0 %v2434
    %2457 = vmatprep.subr.bf16.mxu0 0
    %2458 = vmatpush1.bf16.msra.mxu0 %v2435
    %2459 = vmatprep.subr.bf16.mxu0 0
    %2460 = vmatpush1.bf16.msra.mxu0 %v2436
    %2461 = vmatprep.subr.bf16.mxu0 0
    %2462 = vmatpush1.bf16.msra.mxu0 0
    %2463 = vmatprep.subr.bf16.mxu0 0
    %2464 = vmatpush1.bf16.msra.mxu0 0
    %2465 = vmatprep.subr.bf16.mxu0 0
    %2466 = vmatpush1.bf16.msra.mxu0 0
    %2467 = vmatprep.subr.bf16.mxu0 0
    %2468 = vmatpush1.bf16.msra.mxu0 0
    %2469 = vmatprep.subr.bf16.mxu0 0
    %2470 = vmatpush1.bf16.msra.mxu0 0
    %2471 = vmatprep.subr.bf16.mxu0 0
    %2472 = vmatpush1.bf16.msra.mxu0 0
    %2473 = vmatprep.subr.bf16.mxu0 0
    %2474 = vmatpush1.bf16.msra.mxu0 0
    %2475 = vmatprep.subr.bf16.mxu0 0
    %2476 = vmatpush1.bf16.msra.mxu0 0
    %2477 = vmatprep.mubr.bf16.mxu0 0
    %2478 = vmatmul.mubr.bf16.gmra.mrb[0].mxu0 %v2390
    %v2479 = vpop.f32.mrb[0].mxu0
    %v2480 = vadd.f32 %v2395, %v2479
    %v2481 = vpop.f32.mrb[0].mxu0
    %v2482 = vpop.f32.mrb[0].mxu0
    %v2483 = vpop.f32.mrb[0].mxu0
    %2484 = vdwg.mxu0
    %2485 = vst [vmem:[%s22] sm:$0xff] %v2480
    // Predicated region
    $region86: #{_lambda_.1} parent=1 // pred_check
      _
    $region87: #{_lambda_.1} parent=1 // pred_check_branch
      %2487 = sbr.rel (0) target = $region89
    $region88: #{_lambda_.1} parent=1 // pred_region
      %s2489 = ssub.s32 128, 128
      %2490 = vsyncadd [#allocation3], %s2489
      %s2492 = sshll.u32 [#allocation2], 4
      %s2493 = int_to_ptr.vmem [resolvable:$true] %s2492
      %2495 = dma.vmem_to_hbm [thread:$0]  %s2493, 128, %s21, [#allocation3]
    $region89: #{_lambda_.1} parent=1 // pred_fallthru
      _
    // Predicated region
    $region90: #{_lambda_.1} parent=1 // pred_check
      _
    $region91: #{_lambda_.1} parent=1 // pred_check_branch
      %2497 = sbr.rel (0) target = $region93
    $region92: #{_lambda_.1} parent=1 // pred_region
      _
    $region93: #{_lambda_.1} parent=1 // pred_fallthru
      _
    // Predicated region
    $region94: #{_lambda_.1} parent=1 // pred_check
      _
    $region95: #{_lambda_.1} parent=1 // pred_check_branch
      %2499 = sbr.rel (0) target = $region97
    $region96: #{_lambda_.1} parent=1 // pred_region
      %2500 = dma.done [#allocation3], 128
    $region97: #{_lambda_.1} parent=1 // pred_fallthru
      _
    // Predicated region
    $region98: #{_lambda_.1} parent=1 // pred_check
      _
    $region99: #{_lambda_.1} parent=1 // pred_check_branch
      %2502 = sbr.rel (0) target = $region101
    $region100: #{_lambda_.1} parent=1 // pred_region
      _
    $region101: #{_lambda_.1} parent=1 // pred_fallthru
      _
    %2503 = vsyncpa [#allocation3], 1

</llo_original>
